<compile_context>
chip_gen: v7x
topology: tpu7x:2x2x1
jax: 0.10.0
libtpu: 0.0.40
codegen_flags: <defaults>
</compile_context>

<pallas_src>
import jax
import jax.numpy as jnp
from jax.experimental import pallas as pl
from jax.experimental.pallas import tpu as pltpu


def _sentiment_lstm_kernel(ids_ref, emb_ref, w_ih_ref, w_hh_ref, b_ref,
                           fc_w_ref, fc_b_ref, out_ref, seq_ref):
    """ids: SMEM (B,T) int32; emb: VMEM (V,1,G) f32; w_ih/w_hh: (L,G,G) bf16 (zero-padded rows);
    b: (L,1,G) f32; fc_w: (G,O) bf16 (zero rows >= H); fc_b: (1,O) f32;
    seq_ref: VMEM scratch (T*B, G) f32 holding time-major layer inputs.
    G = 4*H is both the gate width and the padded layer-input row width; gate order [i,f,g,o]."""
    B, T = ids_ref.shape
    L, G, _ = w_ih_ref.shape
    H = G // 4
    V = emb_ref.shape[0]
    N = T * B

    # ---- 1) fused embedding gather -----------------------------------------------------------
    # Rows come from dynamic leading-dim loads of the (V,1,G) table; they are packed into full
    # (8, G) sublane tiles so every seq_ref store is an unmasked full-tile vst.
    sub_iota = jax.lax.broadcasted_iota(jnp.int32, (8, G), 0)

    def _gather_row(flat):
        t, bi = divmod(flat, B)                        # time-major row index t*B + bi
        tok = jnp.clip(ids_ref[bi, t], 0, V - 1)       # clamp: no silent OOB VMEM reads
        return emb_ref[tok]                            # (1, G) dynamic row load

    n_full = (N // 8) * 8
    for base in range(0, n_full, 8):
        tile = jnp.zeros((8, G), jnp.float32)
        for r in range(8):
            row = jnp.broadcast_to(_gather_row(base + r), (8, G))
            tile = jnp.where(sub_iota == r, row, tile)
        seq_ref[base:base + 8, :] = tile               # sublane-dense, unmasked store
    for flat in range(n_full, N):                      # remainder (empty when T*B % 8 == 0)
        seq_ref[flat:flat + 1, :] = _gather_row(flat)

    # Lane mask selecting the tanh-activated g gate (lanes [2H, 3H)); hoisted out of all loops.
    lane = jax.lax.broadcasted_iota(jnp.int32, (B, G), 1)
    g_lane = (lane >= 2 * H) & (lane < 3 * H)

    # ---- 2) stacked LSTM ----------------------------------------------------------------------
    for l in range(L):
        w_ih_l = w_ih_ref[l]           # (G, G) bf16, loaded once per layer
        w_hh_l = w_hh_ref[l]           # (G, G) bf16, weight-stationary across the time loop
        bias_l = b_ref[l]              # (1, G) f32

        # Whole-sequence input projection + bias, hoisted off the serial chain (one MXU call).
        proj = jnp.dot(seq_ref[...].astype(jnp.bfloat16), w_ih_l,
                       preferred_element_type=jnp.float32) + bias_l        # (T*B, G) f32

        h = jnp.zeros((B, G), jnp.float32)
        c = jnp.zeros((B, G), jnp.float32)
        for t in range(T):
            gates = proj[t * B:(t + 1) * B, :] + jnp.dot(
                h.astype(jnp.bfloat16), w_hh_l, preferred_element_type=jnp.float32)
            # Activations over the full 128-lane gate vector: 2 EUP ops + a VPU select.
            a = jnp.where(g_lane, jnp.tanh(gates), jax.nn.sigmoid(gates))
            # Align f/g/o onto the i-gate lanes [0, H) with XLU lane rotates (free slot).
            f_a = pltpu.roll(a, 3 * H, 1)
            g_a = pltpu.roll(a, 2 * H, 1)
            o_a = pltpu.roll(a, 1 * H, 1)
            c = f_a * c + a * g_a            # lanes [0,H) hold the true cell state
            h = o_a * jnp.tanh(c)            # lanes >= H are bounded junk, killed by zero rows
            if l + 1 < L:
                seq_ref[t * B:(t + 1) * B, :] = h      # next layer's input at time t

    # ---- 3) h == out[:, -1, :]; fc1∘fc2 has no nonlinearity in between -> one folded matmul ---
    z = jnp.dot(h.astype(jnp.bfloat16), fc_w_ref[...],
                preferred_element_type=jnp.float32) + fc_b_ref[...]
    out_ref[...] = z.astype(out_ref.dtype)


@jax.jit
def sentiment_lstm_forward(token_ids, kparams):
    B, T = token_ids.shape
    G = kparams["w_ih"].shape[1]                  # 4 * hidden_size
    num_out = kparams["fc_w"].shape[1]
    vmem = pl.BlockSpec(memory_space=pltpu.MemorySpace.VMEM)
    smem = pl.BlockSpec(memory_space=pltpu.MemorySpace.SMEM)
    return pl.pallas_call(
        _sentiment_lstm_kernel,
        out_shape=jax.ShapeDtypeStruct((B, num_out), jnp.float32),
        in_specs=[smem, vmem, vmem, vmem, vmem, vmem, vmem],
        out_specs=vmem,
        scratch_shapes=[pltpu.VMEM((T * B, G), jnp.float32)],
    )(token_ids.astype(jnp.int32),
      kparams["emb"], kparams["w_ih"], kparams["w_hh"], kparams["b"],
      kparams["fc_w"], kparams["fc_b"])


def init_params(key, vocab_size, embedding_dims, hidden_size, num_layers):
    """PyTorch-equivalent parameters, stored pre-transposed for row-major matmuls.
    w_ih[l]: (E_in, 4H), w_hh[l]: (H, 4H), b[l] = b_ih + b_hh: (1, 4H); gate order [i, f, g, o]."""
    H, E, L = hidden_size, embedding_dims, num_layers
    keys = jax.random.split(key, 4 * L + 5)

    def unif(kk, shape, fan_in):
        k = 1.0 / jnp.sqrt(jnp.float32(fan_in))
        return jax.random.uniform(kk, shape, jnp.float32, minval=-k, maxval=k)

    w_ih, w_hh, b = [], [], []
    for l in range(L):
        e_in = E if l == 0 else H
        w_ih.append(unif(keys[4 * l + 0], (e_in, 4 * H), H))
        w_hh.append(unif(keys[4 * l + 1], (H, 4 * H), H))
        b.append(unif(keys[4 * l + 2], (1, 4 * H), H) + unif(keys[4 * l + 3], (1, 4 * H), H))

    o = 4 * L
    return {
        "embedding": jax.random.normal(keys[o], (vocab_size, E), jnp.float32),
        "w_ih": w_ih, "w_hh": w_hh, "b": b,
        "fc1_w": unif(keys[o + 1], (H, 64), H),
        "fc1_b": unif(keys[o + 2], (1, 64), H),
        "fc2_w": unif(keys[o + 3], (64, 3), 64),
        "fc2_b": unif(keys[o + 4], (1, 3), 64),
    }


def pack_params(params):
    """Pad / fold parameters into the layout the kernel expects (done once, offline)."""
    w_ih_l, w_hh_l, b_l = params["w_ih"], params["w_hh"], params["b"]
    L = len(w_ih_l)
    H = w_hh_l[0].shape[0]
    G = 4 * H                       # natural gate width == padded layer-input row width

    w_ih_p = jnp.zeros((L, G, G), jnp.float32)
    w_hh_p = jnp.zeros((L, G, G), jnp.float32)
    b_p = jnp.zeros((L, 1, G), jnp.float32)
    for l in range(L):
        e_in = w_ih_l[l].shape[0]
        w_ih_p = w_ih_p.at[l, :e_in, :].set(w_ih_l[l])    # rows >= E_in stay exactly 0
        w_hh_p = w_hh_p.at[l, :H, :].set(w_hh_l[l])       # rows >= H stay exactly 0
        b_p = b_p.at[l].set(b_l[l])

    emb = params["embedding"]
    V, E = emb.shape
    assert E <= G, "embedding_dims must be <= 4*hidden_size for the padded kernel layout"
    emb_p = jnp.zeros((V, 1, G), jnp.float32).at[:, 0, :E].set(emb)

    # fc2(fc1(x)) has no nonlinearity in between (matches the PyTorch module) -> fold offline.
    fc_w = params["fc1_w"] @ params["fc2_w"]                          # (H, 3)
    fc_b = params["fc1_b"] @ params["fc2_w"] + params["fc2_b"]        # (1, 3)
    fc_w_p = jnp.zeros((G, fc_w.shape[1]), jnp.float32).at[:H, :].set(fc_w)

    return {"emb": emb_p,
            "w_ih": w_ih_p.astype(jnp.bfloat16),          # bf16 MXU operands, f32 accumulation
            "w_hh": w_hh_p.astype(jnp.bfloat16),
            "b": b_p,                                      # bias stays f32 (added to f32 proj)
            "fc_w": fc_w_p.astype(jnp.bfloat16),
            "fc_b": fc_b}


def reference_forward(token_ids, params):
    """Pure-JAX f32 reference mirroring torch.nn.LSTM / the module's forward, for validation."""
    x = jnp.take(params["embedding"], token_ids, axis=0)              # (B, T, E)
    B, T, _ = x.shape
    H = params["w_hh"][0].shape[0]
    for w_ih, w_hh, b in zip(params["w_ih"], params["w_hh"], params["b"]):
        h = jnp.zeros((B, H), jnp.float32)
        c = jnp.zeros((B, H), jnp.float32)
        outs = []
        for t in range(T):
            g = x[:, t, :] @ w_ih + h @ w_hh + b
            i_g = jax.nn.sigmoid(g[:, 0 * H:1 * H])
            f_g = jax.nn.sigmoid(g[:, 1 * H:2 * H])
            g_g = jnp.tanh(g[:, 2 * H:3 * H])
            o_g = jax.nn.sigmoid(g[:, 3 * H:4 * H])
            c = f_g * c + i_g * g_g
            h = o_g * jnp.tanh(c)
            outs.append(h)
        x = jnp.stack(outs, axis=1)
    z = x[:, -1, :] @ params["fc1_w"] + params["fc1_b"]
    return z @ params["fc2_w"] + params["fc2_b"]


if __name__ == "__main__":
    VOCAB, EMB, HIDDEN, LAYERS = 50, 32, 32, 2
    BATCH, SEQ = 2, 8

    key = jax.random.PRNGKey(0)
    pkey, xkey = jax.random.split(key)
    params = init_params(pkey, VOCAB, EMB, HIDDEN, LAYERS)
    # Store parameters at bf16-representable values (rounded once, kept in f32 containers) so the
    # kernel's bf16 matmul operands and the f32 reference use identical parameter values; the
    # remaining kernel-vs-reference drift then comes only from in-kernel activation casts.
    params = jax.tree.map(lambda a: a.astype(jnp.bfloat16).astype(jnp.float32), params)
    kparams = pack_params(params)
    token_ids = jax.random.randint(xkey, (BATCH, SEQ), 0, VOCAB, dtype=jnp.int32)

    out = sentiment_lstm_forward(token_ids, kparams)
    out = jax.block_until_ready(out)

    ref = reference_forward(token_ids, params)
    assert out.shape == (BATCH, 3)
    assert bool(jnp.all(jnp.isfinite(out)))
    # bf16 matmul operands (f32 accumulation) vs the pure-f32 reference of the same params.
    assert jnp.allclose(out, ref, atol=1e-2, rtol=1e-2), (out, ref)
    print("KERNEL_OK")
</pallas_src>

<mosaic_0001>
module attributes {stable_mosaic.version = 11 : i64} {
  func.func @_sentiment_lstm_kernel(%arg0: memref<2x8xi32, #tpu.memory_space<smem>>, %arg1: memref<50x1x128xf32, #tpu.memory_space<vmem>>, %arg2: memref<2x128x128xbf16, #tpu.memory_space<vmem>>, %arg3: memref<2x128x128xbf16, #tpu.memory_space<vmem>>, %arg4: memref<2x1x128xf32, #tpu.memory_space<vmem>>, %arg5: memref<128x3xbf16, #tpu.memory_space<vmem>>, %arg6: memref<1x3xf32, #tpu.memory_space<vmem>>, %arg7: memref<2x3xf32, #tpu.memory_space<vmem>>, %arg8: memref<16x128xf32, #tpu.memory_space<vmem>>) attributes {dimension_semantics = [], scalar_prefetch = 0 : i64, scratch_operands = 1 : i64, tpu.core_type = #tpu.core_type<tc>} {
    %0 = tpu.iota {dimensions = array<i32: 0>} : vector<8x128xi32>
    %cst = arith.constant 0.000000e+00 : f32
    %1 = vector.broadcast %cst : f32 to vector<8x128xf32>
    %c0 = arith.constant 0 : index
    %c0_0 = arith.constant 0 : index
    %2 = memref.load %arg0[%c0, %c0_0] : memref<2x8xi32, #tpu.memory_space<smem>>
    %c0_i32 = arith.constant 0 : i32
    %c49_i32 = arith.constant 49 : i32
    %3 = arith.maxsi %c0_i32, %2 : i32
    %4 = arith.minsi %c49_i32, %3 : i32
    %5 = arith.index_cast %4 : i32 to index
    %c0_1 = arith.constant 0 : index
    %c0_2 = arith.constant 0 : index
    %6 = vector.load %arg1[%5, %c0_1, %c0_2] : memref<50x1x128xf32, #tpu.memory_space<vmem>>, vector<1x1x128xf32>
    %7 = vector.shape_cast %6 : vector<1x1x128xf32> to vector<1x128xf32>
    %8 = vector.shape_cast %7 : vector<1x128xf32> to vector<1x128xf32>
    %9 = vector.broadcast %8 : vector<1x128xf32> to vector<8x128xf32>
    %c0_i32_3 = arith.constant 0 : i32
    %10 = vector.broadcast %c0_i32_3 : i32 to vector<8x128xi32>
    %11 = arith.cmpi eq, %0, %10 : vector<8x128xi32>
    %12 = arith.select %11, %9, %1 : vector<8x128xi1>, vector<8x128xf32>
    %c1 = arith.constant 1 : index
    %c0_4 = arith.constant 0 : index
    %13 = memref.load %arg0[%c1, %c0_4] : memref<2x8xi32, #tpu.memory_space<smem>>
    %c0_i32_5 = arith.constant 0 : i32
    %c49_i32_6 = arith.constant 49 : i32
    %14 = arith.maxsi %c0_i32_5, %13 : i32
    %15 = arith.minsi %c49_i32_6, %14 : i32
    %16 = arith.index_cast %15 : i32 to index
    %c0_7 = arith.constant 0 : index
    %c0_8 = arith.constant 0 : index
    %17 = vector.load %arg1[%16, %c0_7, %c0_8] : memref<50x1x128xf32, #tpu.memory_space<vmem>>, vector<1x1x128xf32>
    %18 = vector.shape_cast %17 : vector<1x1x128xf32> to vector<1x128xf32>
    %19 = vector.shape_cast %18 : vector<1x128xf32> to vector<1x128xf32>
    %20 = vector.broadcast %19 : vector<1x128xf32> to vector<8x128xf32>
    %c1_i32 = arith.constant 1 : i32
    %21 = vector.broadcast %c1_i32 : i32 to vector<8x128xi32>
    %22 = arith.cmpi eq, %0, %21 : vector<8x128xi32>
    %23 = arith.select %22, %20, %12 : vector<8x128xi1>, vector<8x128xf32>
    %c0_9 = arith.constant 0 : index
    %c1_10 = arith.constant 1 : index
    %24 = memref.load %arg0[%c0_9, %c1_10] : memref<2x8xi32, #tpu.memory_space<smem>>
    %c0_i32_11 = arith.constant 0 : i32
    %c49_i32_12 = arith.constant 49 : i32
    %25 = arith.maxsi %c0_i32_11, %24 : i32
    %26 = arith.minsi %c49_i32_12, %25 : i32
    %27 = arith.index_cast %26 : i32 to index
    %c0_13 = arith.constant 0 : index
    %c0_14 = arith.constant 0 : index
    %28 = vector.load %arg1[%27, %c0_13, %c0_14] : memref<50x1x128xf32, #tpu.memory_space<vmem>>, vector<1x1x128xf32>
    %29 = vector.shape_cast %28 : vector<1x1x128xf32> to vector<1x128xf32>
    %30 = vector.shape_cast %29 : vector<1x128xf32> to vector<1x128xf32>
    %31 = vector.broadcast %30 : vector<1x128xf32> to vector<8x128xf32>
    %c2_i32 = arith.constant 2 : i32
    %32 = vector.broadcast %c2_i32 : i32 to vector<8x128xi32>
    %33 = arith.cmpi eq, %0, %32 : vector<8x128xi32>
    %34 = arith.select %33, %31, %23 : vector<8x128xi1>, vector<8x128xf32>
    %c1_15 = arith.constant 1 : index
    %c1_16 = arith.constant 1 : index
    %35 = memref.load %arg0[%c1_15, %c1_16] : memref<2x8xi32, #tpu.memory_space<smem>>
    %c0_i32_17 = arith.constant 0 : i32
    %c49_i32_18 = arith.constant 49 : i32
    %36 = arith.maxsi %c0_i32_17, %35 : i32
    %37 = arith.minsi %c49_i32_18, %36 : i32
    %38 = arith.index_cast %37 : i32 to index
    %c0_19 = arith.constant 0 : index
    %c0_20 = arith.constant 0 : index
    %39 = vector.load %arg1[%38, %c0_19, %c0_20] : memref<50x1x128xf32, #tpu.memory_space<vmem>>, vector<1x1x128xf32>
    %40 = vector.shape_cast %39 : vector<1x1x128xf32> to vector<1x128xf32>
    %41 = vector.shape_cast %40 : vector<1x128xf32> to vector<1x128xf32>
    %42 = vector.broadcast %41 : vector<1x128xf32> to vector<8x128xf32>
    %c3_i32 = arith.constant 3 : i32
    %43 = vector.broadcast %c3_i32 : i32 to vector<8x128xi32>
    %44 = arith.cmpi eq, %0, %43 : vector<8x128xi32>
    %45 = arith.select %44, %42, %34 : vector<8x128xi1>, vector<8x128xf32>
    %c0_21 = arith.constant 0 : index
    %c2 = arith.constant 2 : index
    %46 = memref.load %arg0[%c0_21, %c2] : memref<2x8xi32, #tpu.memory_space<smem>>
    %c0_i32_22 = arith.constant 0 : i32
    %c49_i32_23 = arith.constant 49 : i32
    %47 = arith.maxsi %c0_i32_22, %46 : i32
    %48 = arith.minsi %c49_i32_23, %47 : i32
    %49 = arith.index_cast %48 : i32 to index
    %c0_24 = arith.constant 0 : index
    %c0_25 = arith.constant 0 : index
    %50 = vector.load %arg1[%49, %c0_24, %c0_25] : memref<50x1x128xf32, #tpu.memory_space<vmem>>, vector<1x1x128xf32>
    %51 = vector.shape_cast %50 : vector<1x1x128xf32> to vector<1x128xf32>
    %52 = vector.shape_cast %51 : vector<1x128xf32> to vector<1x128xf32>
    %53 = vector.broadcast %52 : vector<1x128xf32> to vector<8x128xf32>
    %c4_i32 = arith.constant 4 : i32
    %54 = vector.broadcast %c4_i32 : i32 to vector<8x128xi32>
    %55 = arith.cmpi eq, %0, %54 : vector<8x128xi32>
    %56 = arith.select %55, %53, %45 : vector<8x128xi1>, vector<8x128xf32>
    %c1_26 = arith.constant 1 : index
    %c2_27 = arith.constant 2 : index
    %57 = memref.load %arg0[%c1_26, %c2_27] : memref<2x8xi32, #tpu.memory_space<smem>>
    %c0_i32_28 = arith.constant 0 : i32
    %c49_i32_29 = arith.constant 49 : i32
    %58 = arith.maxsi %c0_i32_28, %57 : i32
    %59 = arith.minsi %c49_i32_29, %58 : i32
    %60 = arith.index_cast %59 : i32 to index
    %c0_30 = arith.constant 0 : index
    %c0_31 = arith.constant 0 : index
    %61 = vector.load %arg1[%60, %c0_30, %c0_31] : memref<50x1x128xf32, #tpu.memory_space<vmem>>, vector<1x1x128xf32>
    %62 = vector.shape_cast %61 : vector<1x1x128xf32> to vector<1x128xf32>
    %63 = vector.shape_cast %62 : vector<1x128xf32> to vector<1x128xf32>
    %64 = vector.broadcast %63 : vector<1x128xf32> to vector<8x128xf32>
    %c5_i32 = arith.constant 5 : i32
    %65 = vector.broadcast %c5_i32 : i32 to vector<8x128xi32>
    %66 = arith.cmpi eq, %0, %65 : vector<8x128xi32>
    %67 = arith.select %66, %64, %56 : vector<8x128xi1>, vector<8x128xf32>
    %c0_32 = arith.constant 0 : index
    %c3 = arith.constant 3 : index
    %68 = memref.load %arg0[%c0_32, %c3] : memref<2x8xi32, #tpu.memory_space<smem>>
    %c0_i32_33 = arith.constant 0 : i32
    %c49_i32_34 = arith.constant 49 : i32
    %69 = arith.maxsi %c0_i32_33, %68 : i32
    %70 = arith.minsi %c49_i32_34, %69 : i32
    %71 = arith.index_cast %70 : i32 to index
    %c0_35 = arith.constant 0 : index
    %c0_36 = arith.constant 0 : index
    %72 = vector.load %arg1[%71, %c0_35, %c0_36] : memref<50x1x128xf32, #tpu.memory_space<vmem>>, vector<1x1x128xf32>
    %73 = vector.shape_cast %72 : vector<1x1x128xf32> to vector<1x128xf32>
    %74 = vector.shape_cast %73 : vector<1x128xf32> to vector<1x128xf32>
    %75 = vector.broadcast %74 : vector<1x128xf32> to vector<8x128xf32>
    %c6_i32 = arith.constant 6 : i32
    %76 = vector.broadcast %c6_i32 : i32 to vector<8x128xi32>
    %77 = arith.cmpi eq, %0, %76 : vector<8x128xi32>
    %78 = arith.select %77, %75, %67 : vector<8x128xi1>, vector<8x128xf32>
    %c1_37 = arith.constant 1 : index
    %c3_38 = arith.constant 3 : index
    %79 = memref.load %arg0[%c1_37, %c3_38] : memref<2x8xi32, #tpu.memory_space<smem>>
    %c0_i32_39 = arith.constant 0 : i32
    %c49_i32_40 = arith.constant 49 : i32
    %80 = arith.maxsi %c0_i32_39, %79 : i32
    %81 = arith.minsi %c49_i32_40, %80 : i32
    %82 = arith.index_cast %81 : i32 to index
    %c0_41 = arith.constant 0 : index
    %c0_42 = arith.constant 0 : index
    %83 = vector.load %arg1[%82, %c0_41, %c0_42] : memref<50x1x128xf32, #tpu.memory_space<vmem>>, vector<1x1x128xf32>
    %84 = vector.shape_cast %83 : vector<1x1x128xf32> to vector<1x128xf32>
    %85 = vector.shape_cast %84 : vector<1x128xf32> to vector<1x128xf32>
    %86 = vector.broadcast %85 : vector<1x128xf32> to vector<8x128xf32>
    %c7_i32 = arith.constant 7 : i32
    %87 = vector.broadcast %c7_i32 : i32 to vector<8x128xi32>
    %88 = arith.cmpi eq, %0, %87 : vector<8x128xi32>
    %89 = arith.select %88, %86, %78 : vector<8x128xi1>, vector<8x128xf32>
    %c0_43 = arith.constant 0 : index
    %c0_44 = arith.constant 0 : index
    %90 = vector.load %arg8[%c0_43, %c0_44] : memref<16x128xf32, #tpu.memory_space<vmem>>, vector<8x128xf32>
    tpu.vector_store %arg8[%c0_43, %c0_44], %89 {strides = array<i32>} : memref<16x128xf32, #tpu.memory_space<vmem>>, vector<8x128xf32>,
    %cst_45 = arith.constant 0.000000e+00 : f32
    %91 = vector.broadcast %cst_45 : f32 to vector<8x128xf32>
    %c0_46 = arith.constant 0 : index
    %c4 = arith.constant 4 : index
    %92 = memref.load %arg0[%c0_46, %c4] : memref<2x8xi32, #tpu.memory_space<smem>>
    %c0_i32_47 = arith.constant 0 : i32
    %c49_i32_48 = arith.constant 49 : i32
    %93 = arith.maxsi %c0_i32_47, %92 : i32
    %94 = arith.minsi %c49_i32_48, %93 : i32
    %95 = arith.index_cast %94 : i32 to index
    %c0_49 = arith.constant 0 : index
    %c0_50 = arith.constant 0 : index
    %96 = vector.load %arg1[%95, %c0_49, %c0_50] : memref<50x1x128xf32, #tpu.memory_space<vmem>>, vector<1x1x128xf32>
    %97 = vector.shape_cast %96 : vector<1x1x128xf32> to vector<1x128xf32>
    %98 = vector.shape_cast %97 : vector<1x128xf32> to vector<1x128xf32>
    %99 = vector.broadcast %98 : vector<1x128xf32> to vector<8x128xf32>
    %c0_i32_51 = arith.constant 0 : i32
    %100 = vector.broadcast %c0_i32_51 : i32 to vector<8x128xi32>
    %101 = arith.cmpi eq, %0, %100 : vector<8x128xi32>
    %102 = arith.select %101, %99, %91 : vector<8x128xi1>, vector<8x128xf32>
    %c1_52 = arith.constant 1 : index
    %c4_53 = arith.constant 4 : index
    %103 = memref.load %arg0[%c1_52, %c4_53] : memref<2x8xi32, #tpu.memory_space<smem>>
    %c0_i32_54 = arith.constant 0 : i32
    %c49_i32_55 = arith.constant 49 : i32
    %104 = arith.maxsi %c0_i32_54, %103 : i32
    %105 = arith.minsi %c49_i32_55, %104 : i32
    %106 = arith.index_cast %105 : i32 to index
    %c0_56 = arith.constant 0 : index
    %c0_57 = arith.constant 0 : index
    %107 = vector.load %arg1[%106, %c0_56, %c0_57] : memref<50x1x128xf32, #tpu.memory_space<vmem>>, vector<1x1x128xf32>
    %108 = vector.shape_cast %107 : vector<1x1x128xf32> to vector<1x128xf32>
    %109 = vector.shape_cast %108 : vector<1x128xf32> to vector<1x128xf32>
    %110 = vector.broadcast %109 : vector<1x128xf32> to vector<8x128xf32>
    %c1_i32_58 = arith.constant 1 : i32
    %111 = vector.broadcast %c1_i32_58 : i32 to vector<8x128xi32>
    %112 = arith.cmpi eq, %0, %111 : vector<8x128xi32>
    %113 = arith.select %112, %110, %102 : vector<8x128xi1>, vector<8x128xf32>
    %c0_59 = arith.constant 0 : index
    %c5 = arith.constant 5 : index
    %114 = memref.load %arg0[%c0_59, %c5] : memref<2x8xi32, #tpu.memory_space<smem>>
    %c0_i32_60 = arith.constant 0 : i32
    %c49_i32_61 = arith.constant 49 : i32
    %115 = arith.maxsi %c0_i32_60, %114 : i32
    %116 = arith.minsi %c49_i32_61, %115 : i32
    %117 = arith.index_cast %116 : i32 to index
    %c0_62 = arith.constant 0 : index
    %c0_63 = arith.constant 0 : index
    %118 = vector.load %arg1[%117, %c0_62, %c0_63] : memref<50x1x128xf32, #tpu.memory_space<vmem>>, vector<1x1x128xf32>
    %119 = vector.shape_cast %118 : vector<1x1x128xf32> to vector<1x128xf32>
    %120 = vector.shape_cast %119 : vector<1x128xf32> to vector<1x128xf32>
    %121 = vector.broadcast %120 : vector<1x128xf32> to vector<8x128xf32>
    %c2_i32_64 = arith.constant 2 : i32
    %122 = vector.broadcast %c2_i32_64 : i32 to vector<8x128xi32>
    %123 = arith.cmpi eq, %0, %122 : vector<8x128xi32>
    %124 = arith.select %123, %121, %113 : vector<8x128xi1>, vector<8x128xf32>
    %c1_65 = arith.constant 1 : index
    %c5_66 = arith.constant 5 : index
    %125 = memref.load %arg0[%c1_65, %c5_66] : memref<2x8xi32, #tpu.memory_space<smem>>
    %c0_i32_67 = arith.constant 0 : i32
    %c49_i32_68 = arith.constant 49 : i32
    %126 = arith.maxsi %c0_i32_67, %125 : i32
    %127 = arith.minsi %c49_i32_68, %126 : i32
    %128 = arith.index_cast %127 : i32 to index
    %c0_69 = arith.constant 0 : index
    %c0_70 = arith.constant 0 : index
    %129 = vector.load %arg1[%128, %c0_69, %c0_70] : memref<50x1x128xf32, #tpu.memory_space<vmem>>, vector<1x1x128xf32>
    %130 = vector.shape_cast %129 : vector<1x1x128xf32> to vector<1x128xf32>
    %131 = vector.shape_cast %130 : vector<1x128xf32> to vector<1x128xf32>
    %132 = vector.broadcast %131 : vector<1x128xf32> to vector<8x128xf32>
    %c3_i32_71 = arith.constant 3 : i32
    %133 = vector.broadcast %c3_i32_71 : i32 to vector<8x128xi32>
    %134 = arith.cmpi eq, %0, %133 : vector<8x128xi32>
    %135 = arith.select %134, %132, %124 : vector<8x128xi1>, vector<8x128xf32>
    %c0_72 = arith.constant 0 : index
    %c6 = arith.constant 6 : index
    %136 = memref.load %arg0[%c0_72, %c6] : memref<2x8xi32, #tpu.memory_space<smem>>
    %c0_i32_73 = arith.constant 0 : i32
    %c49_i32_74 = arith.constant 49 : i32
    %137 = arith.maxsi %c0_i32_73, %136 : i32
    %138 = arith.minsi %c49_i32_74, %137 : i32
    %139 = arith.index_cast %138 : i32 to index
    %c0_75 = arith.constant 0 : index
    %c0_76 = arith.constant 0 : index
    %140 = vector.load %arg1[%139, %c0_75, %c0_76] : memref<50x1x128xf32, #tpu.memory_space<vmem>>, vector<1x1x128xf32>
    %141 = vector.shape_cast %140 : vector<1x1x128xf32> to vector<1x128xf32>
    %142 = vector.shape_cast %141 : vector<1x128xf32> to vector<1x128xf32>
    %143 = vector.broadcast %142 : vector<1x128xf32> to vector<8x128xf32>
    %c4_i32_77 = arith.constant 4 : i32
    %144 = vector.broadcast %c4_i32_77 : i32 to vector<8x128xi32>
    %145 = arith.cmpi eq, %0, %144 : vector<8x128xi32>
    %146 = arith.select %145, %143, %135 : vector<8x128xi1>, vector<8x128xf32>
    %c1_78 = arith.constant 1 : index
    %c6_79 = arith.constant 6 : index
    %147 = memref.load %arg0[%c1_78, %c6_79] : memref<2x8xi32, #tpu.memory_space<smem>>
    %c0_i32_80 = arith.constant 0 : i32
    %c49_i32_81 = arith.constant 49 : i32
    %148 = arith.maxsi %c0_i32_80, %147 : i32
    %149 = arith.minsi %c49_i32_81, %148 : i32
    %150 = arith.index_cast %149 : i32 to index
    %c0_82 = arith.constant 0 : index
    %c0_83 = arith.constant 0 : index
    %151 = vector.load %arg1[%150, %c0_82, %c0_83] : memref<50x1x128xf32, #tpu.memory_space<vmem>>, vector<1x1x128xf32>
    %152 = vector.shape_cast %151 : vector<1x1x128xf32> to vector<1x128xf32>
    %153 = vector.shape_cast %152 : vector<1x128xf32> to vector<1x128xf32>
    %154 = vector.broadcast %153 : vector<1x128xf32> to vector<8x128xf32>
    %c5_i32_84 = arith.constant 5 : i32
    %155 = vector.broadcast %c5_i32_84 : i32 to vector<8x128xi32>
    %156 = arith.cmpi eq, %0, %155 : vector<8x128xi32>
    %157 = arith.select %156, %154, %146 : vector<8x128xi1>, vector<8x128xf32>
    %c0_85 = arith.constant 0 : index
    %c7 = arith.constant 7 : index
    %158 = memref.load %arg0[%c0_85, %c7] : memref<2x8xi32, #tpu.memory_space<smem>>
    %c0_i32_86 = arith.constant 0 : i32
    %c49_i32_87 = arith.constant 49 : i32
    %159 = arith.maxsi %c0_i32_86, %158 : i32
    %160 = arith.minsi %c49_i32_87, %159 : i32
    %161 = arith.index_cast %160 : i32 to index
    %c0_88 = arith.constant 0 : index
    %c0_89 = arith.constant 0 : index
    %162 = vector.load %arg1[%161, %c0_88, %c0_89] : memref<50x1x128xf32, #tpu.memory_space<vmem>>, vector<1x1x128xf32>
    %163 = vector.shape_cast %162 : vector<1x1x128xf32> to vector<1x128xf32>
    %164 = vector.shape_cast %163 : vector<1x128xf32> to vector<1x128xf32>
    %165 = vector.broadcast %164 : vector<1x128xf32> to vector<8x128xf32>
    %c6_i32_90 = arith.constant 6 : i32
    %166 = vector.broadcast %c6_i32_90 : i32 to vector<8x128xi32>
    %167 = arith.cmpi eq, %0, %166 : vector<8x128xi32>
    %168 = arith.select %167, %165, %157 : vector<8x128xi1>, vector<8x128xf32>
    %c1_91 = arith.constant 1 : index
    %c7_92 = arith.constant 7 : index
    %169 = memref.load %arg0[%c1_91, %c7_92] : memref<2x8xi32, #tpu.memory_space<smem>>
    %c0_i32_93 = arith.constant 0 : i32
    %c49_i32_94 = arith.constant 49 : i32
    %170 = arith.maxsi %c0_i32_93, %169 : i32
    %171 = arith.minsi %c49_i32_94, %170 : i32
    %172 = arith.index_cast %171 : i32 to index
    %c0_95 = arith.constant 0 : index
    %c0_96 = arith.constant 0 : index
    %173 = vector.load %arg1[%172, %c0_95, %c0_96] : memref<50x1x128xf32, #tpu.memory_space<vmem>>, vector<1x1x128xf32>
    %174 = vector.shape_cast %173 : vector<1x1x128xf32> to vector<1x128xf32>
    %175 = vector.shape_cast %174 : vector<1x128xf32> to vector<1x128xf32>
    %176 = vector.broadcast %175 : vector<1x128xf32> to vector<8x128xf32>
    %c7_i32_97 = arith.constant 7 : i32
    %177 = vector.broadcast %c7_i32_97 : i32 to vector<8x128xi32>
    %178 = arith.cmpi eq, %0, %177 : vector<8x128xi32>
    %179 = arith.select %178, %176, %168 : vector<8x128xi1>, vector<8x128xf32>
    %c8 = arith.constant 8 : index
    %c0_98 = arith.constant 0 : index
    %180 = vector.load %arg8[%c8, %c0_98] : memref<16x128xf32, #tpu.memory_space<vmem>>, vector<8x128xf32>
    tpu.vector_store %arg8[%c8, %c0_98], %179 {strides = array<i32>} : memref<16x128xf32, #tpu.memory_space<vmem>>, vector<8x128xf32>,
    %181 = tpu.iota {dimensions = array<i32: 1>} : vector<2x128xi32>
    %c64_i32 = arith.constant 64 : i32
    %182 = vector.broadcast %c64_i32 : i32 to vector<2x128xi32>
    %183 = arith.cmpi sge, %181, %182 : vector<2x128xi32>
    %c96_i32 = arith.constant 96 : i32
    %184 = vector.broadcast %c96_i32 : i32 to vector<2x128xi32>
    %185 = arith.cmpi slt, %181, %184 : vector<2x128xi32>
    %186 = arith.andi %183, %185 : vector<2x128xi1>
    %c0_99 = arith.constant 0 : index
    %c0_100 = arith.constant 0 : index
    %c0_101 = arith.constant 0 : index
    %187 = vector.load %arg2[%c0_99, %c0_100, %c0_101] : memref<2x128x128xbf16, #tpu.memory_space<vmem>>, vector<1x128x128xbf16>
    %188 = vector.shape_cast %187 : vector<1x128x128xbf16> to vector<128x128xbf16>
    %c0_102 = arith.constant 0 : index
    %c0_103 = arith.constant 0 : index
    %c0_104 = arith.constant 0 : index
    %189 = vector.load %arg3[%c0_102, %c0_103, %c0_104] : memref<2x128x128xbf16, #tpu.memory_space<vmem>>, vector<1x128x128xbf16>
    %190 = vector.shape_cast %189 : vector<1x128x128xbf16> to vector<128x128xbf16>
    %c0_105 = arith.constant 0 : index
    %c0_106 = arith.constant 0 : index
    %c0_107 = arith.constant 0 : index
    %191 = vector.load %arg4[%c0_105, %c0_106, %c0_107] : memref<2x1x128xf32, #tpu.memory_space<vmem>>, vector<1x1x128xf32>
    %192 = vector.shape_cast %191 : vector<1x1x128xf32> to vector<1x128xf32>
    %c0_108 = arith.constant 0 : index
    %c0_109 = arith.constant 0 : index
    %193 = vector.load %arg8[%c0_108, %c0_109] : memref<16x128xf32, #tpu.memory_space<vmem>>, vector<16x128xf32>
    %194 = arith.truncf %193 : vector<16x128xf32> to vector<16x128xbf16>
    %cst_110 = arith.constant dense<0.000000e+00> : vector<16x128xf32>
    %195 = tpu.matmul %194, %188, %cst_110 {dimension_numbers = #tpu.dot_dimension_numbers<[1], [0], [0], [1], [0, 0, 1, 1], [], []>} : vector<16x128xbf16>, vector<128x128xbf16>, vector<16x128xf32> -> vector<16x128xf32>
    %196 = vector.broadcast %192 : vector<1x128xf32> to vector<16x128xf32>
    %197 = arith.addf %195, %196 : vector<16x128xf32>
    %cst_111 = arith.constant 0.000000e+00 : f32
    %198 = vector.broadcast %cst_111 : f32 to vector<2x128xf32>
    %cst_112 = arith.constant 0.000000e+00 : f32
    %199 = vector.broadcast %cst_112 : f32 to vector<2x128xf32>
    %200 = vector.extract_strided_slice %197 {offsets = [0, 0], sizes = [2, 128], strides = [1, 1]} : vector<16x128xf32> to vector<2x128xf32>
    %201 = arith.truncf %198 : vector<2x128xf32> to vector<2x128xbf16>
    %cst_113 = arith.constant dense<0.000000e+00> : vector<2x128xf32>
    %202 = tpu.matmul %201, %190, %cst_113 {dimension_numbers = #tpu.dot_dimension_numbers<[1], [0], [0], [1], [0, 0, 1, 1], [], []>} : vector<2x128xbf16>, vector<128x128xbf16>, vector<2x128xf32> -> vector<2x128xf32>
    %203 = arith.addf %200, %202 : vector<2x128xf32>
    %204 = math.tanh %203 : vector<2x128xf32>
    %205 = arith.negf %203 : vector<2x128xf32>
    %206 = math.exp %205 : vector<2x128xf32>
    %cst_114 = arith.constant 1.000000e+00 : f32
    %207 = vector.broadcast %cst_114 : f32 to vector<2x128xf32>
    %208 = arith.addf %207, %206 : vector<2x128xf32>
    %209 = arith.divf %207, %208 : vector<2x128xf32>
    %210 = arith.select %186, %204, %209 : vector<2x128xi1>, vector<2x128xf32>
    %c96_i32_115 = arith.constant 96 : i32
    %211 = tpu.dynamic_rotate %210 by %c96_i32_115 dim 1 : vector<2x128xf32>, i32 -> vector<2x128xf32>
    %c64_i32_116 = arith.constant 64 : i32
    %212 = tpu.dynamic_rotate %210 by %c64_i32_116 dim 1 : vector<2x128xf32>, i32 -> vector<2x128xf32>
    %c32_i32 = arith.constant 32 : i32
    %213 = tpu.dynamic_rotate %210 by %c32_i32 dim 1 : vector<2x128xf32>, i32 -> vector<2x128xf32>
    %214 = arith.mulf %211, %199 : vector<2x128xf32>
    %215 = arith.mulf %210, %212 : vector<2x128xf32>
    %216 = arith.addf %214, %215 : vector<2x128xf32>
    %217 = math.tanh %216 : vector<2x128xf32>
    %218 = arith.mulf %213, %217 : vector<2x128xf32>
    %c0_117 = arith.constant 0 : index
    %c0_118 = arith.constant 0 : index
    %219 = vector.load %arg8[%c0_117, %c0_118] : memref<16x128xf32, #tpu.memory_space<vmem>>, vector<2x128xf32>
    tpu.vector_store %arg8[%c0_117, %c0_118], %218 {strides = array<i32>} : memref<16x128xf32, #tpu.memory_space<vmem>>, vector<2x128xf32>,
    %220 = vector.extract_strided_slice %197 {offsets = [2, 0], sizes = [2, 128], strides = [1, 1]} : vector<16x128xf32> to vector<2x128xf32>
    %221 = arith.truncf %218 : vector<2x128xf32> to vector<2x128xbf16>
    %cst_119 = arith.constant dense<0.000000e+00> : vector<2x128xf32>
    %222 = tpu.matmul %221, %190, %cst_119 {dimension_numbers = #tpu.dot_dimension_numbers<[1], [0], [0], [1], [0, 0, 1, 1], [], []>} : vector<2x128xbf16>, vector<128x128xbf16>, vector<2x128xf32> -> vector<2x128xf32>
    %223 = arith.addf %220, %222 : vector<2x128xf32>
    %224 = math.tanh %223 : vector<2x128xf32>
    %225 = arith.negf %223 : vector<2x128xf32>
    %226 = math.exp %225 : vector<2x128xf32>
    %cst_120 = arith.constant 1.000000e+00 : f32
    %227 = vector.broadcast %cst_120 : f32 to vector<2x128xf32>
    %228 = arith.addf %227, %226 : vector<2x128xf32>
    %229 = arith.divf %227, %228 : vector<2x128xf32>
    %230 = arith.select %186, %224, %229 : vector<2x128xi1>, vector<2x128xf32>
    %c96_i32_121 = arith.constant 96 : i32
    %231 = tpu.dynamic_rotate %230 by %c96_i32_121 dim 1 : vector<2x128xf32>, i32 -> vector<2x128xf32>
    %c64_i32_122 = arith.constant 64 : i32
    %232 = tpu.dynamic_rotate %230 by %c64_i32_122 dim 1 : vector<2x128xf32>, i32 -> vector<2x128xf32>
    %c32_i32_123 = arith.constant 32 : i32
    %233 = tpu.dynamic_rotate %230 by %c32_i32_123 dim 1 : vector<2x128xf32>, i32 -> vector<2x128xf32>
    %234 = arith.mulf %231, %216 : vector<2x128xf32>
    %235 = arith.mulf %230, %232 : vector<2x128xf32>
    %236 = arith.addf %234, %235 : vector<2x128xf32>
    %237 = math.tanh %236 : vector<2x128xf32>
    %238 = arith.mulf %233, %237 : vector<2x128xf32>
    %c2_124 = arith.constant 2 : index
    %c0_125 = arith.constant 0 : index
    %239 = vector.load %arg8[%c2_124, %c0_125] : memref<16x128xf32, #tpu.memory_space<vmem>>, vector<2x128xf32>
    tpu.vector_store %arg8[%c2_124, %c0_125], %238 {strides = array<i32>} : memref<16x128xf32, #tpu.memory_space<vmem>>, vector<2x128xf32>,
    %240 = vector.extract_strided_slice %197 {offsets = [4, 0], sizes = [2, 128], strides = [1, 1]} : vector<16x128xf32> to vector<2x128xf32>
    %241 = arith.truncf %238 : vector<2x128xf32> to vector<2x128xbf16>
    %cst_126 = arith.constant dense<0.000000e+00> : vector<2x128xf32>
    %242 = tpu.matmul %241, %190, %cst_126 {dimension_numbers = #tpu.dot_dimension_numbers<[1], [0], [0], [1], [0, 0, 1, 1], [], []>} : vector<2x128xbf16>, vector<128x128xbf16>, vector<2x128xf32> -> vector<2x128xf32>
    %243 = arith.addf %240, %242 : vector<2x128xf32>
    %244 = math.tanh %243 : vector<2x128xf32>
    %245 = arith.negf %243 : vector<2x128xf32>
    %246 = math.exp %245 : vector<2x128xf32>
    %cst_127 = arith.constant 1.000000e+00 : f32
    %247 = vector.broadcast %cst_127 : f32 to vector<2x128xf32>
    %248 = arith.addf %247, %246 : vector<2x128xf32>
    %249 = arith.divf %247, %248 : vector<2x128xf32>
    %250 = arith.select %186, %244, %249 : vector<2x128xi1>, vector<2x128xf32>
    %c96_i32_128 = arith.constant 96 : i32
    %251 = tpu.dynamic_rotate %250 by %c96_i32_128 dim 1 : vector<2x128xf32>, i32 -> vector<2x128xf32>
    %c64_i32_129 = arith.constant 64 : i32
    %252 = tpu.dynamic_rotate %250 by %c64_i32_129 dim 1 : vector<2x128xf32>, i32 -> vector<2x128xf32>
    %c32_i32_130 = arith.constant 32 : i32
    %253 = tpu.dynamic_rotate %250 by %c32_i32_130 dim 1 : vector<2x128xf32>, i32 -> vector<2x128xf32>
    %254 = arith.mulf %251, %236 : vector<2x128xf32>
    %255 = arith.mulf %250, %252 : vector<2x128xf32>
    %256 = arith.addf %254, %255 : vector<2x128xf32>
    %257 = math.tanh %256 : vector<2x128xf32>
    %258 = arith.mulf %253, %257 : vector<2x128xf32>
    %c4_131 = arith.constant 4 : index
    %c0_132 = arith.constant 0 : index
    %259 = vector.load %arg8[%c4_131, %c0_132] : memref<16x128xf32, #tpu.memory_space<vmem>>, vector<2x128xf32>
    tpu.vector_store %arg8[%c4_131, %c0_132], %258 {strides = array<i32>} : memref<16x128xf32, #tpu.memory_space<vmem>>, vector<2x128xf32>,
    %260 = vector.extract_strided_slice %197 {offsets = [6, 0], sizes = [2, 128], strides = [1, 1]} : vector<16x128xf32> to vector<2x128xf32>
    %261 = arith.truncf %258 : vector<2x128xf32> to vector<2x128xbf16>
    %cst_133 = arith.constant dense<0.000000e+00> : vector<2x128xf32>
    %262 = tpu.matmul %261, %190, %cst_133 {dimension_numbers = #tpu.dot_dimension_numbers<[1], [0], [0], [1], [0, 0, 1, 1], [], []>} : vector<2x128xbf16>, vector<128x128xbf16>, vector<2x128xf32> -> vector<2x128xf32>
    %263 = arith.addf %260, %262 : vector<2x128xf32>
    %264 = math.tanh %263 : vector<2x128xf32>
    %265 = arith.negf %263 : vector<2x128xf32>
    %266 = math.exp %265 : vector<2x128xf32>
    %cst_134 = arith.constant 1.000000e+00 : f32
    %267 = vector.broadcast %cst_134 : f32 to vector<2x128xf32>
    %268 = arith.addf %267, %266 : vector<2x128xf32>
    %269 = arith.divf %267, %268 : vector<2x128xf32>
    %270 = arith.select %186, %264, %269 : vector<2x128xi1>, vector<2x128xf32>
    %c96_i32_135 = arith.constant 96 : i32
    %271 = tpu.dynamic_rotate %270 by %c96_i32_135 dim 1 : vector<2x128xf32>, i32 -> vector<2x128xf32>
    %c64_i32_136 = arith.constant 64 : i32
    %272 = tpu.dynamic_rotate %270 by %c64_i32_136 dim 1 : vector<2x128xf32>, i32 -> vector<2x128xf32>
    %c32_i32_137 = arith.constant 32 : i32
    %273 = tpu.dynamic_rotate %270 by %c32_i32_137 dim 1 : vector<2x128xf32>, i32 -> vector<2x128xf32>
    %274 = arith.mulf %271, %256 : vector<2x128xf32>
    %275 = arith.mulf %270, %272 : vector<2x128xf32>
    %276 = arith.addf %274, %275 : vector<2x128xf32>
    %277 = math.tanh %276 : vector<2x128xf32>
    %278 = arith.mulf %273, %277 : vector<2x128xf32>
    %c6_138 = arith.constant 6 : index
    %c0_139 = arith.constant 0 : index
    %279 = vector.load %arg8[%c6_138, %c0_139] : memref<16x128xf32, #tpu.memory_space<vmem>>, vector<2x128xf32>
    tpu.vector_store %arg8[%c6_138, %c0_139], %278 {strides = array<i32>} : memref<16x128xf32, #tpu.memory_space<vmem>>, vector<2x128xf32>,
    %280 = vector.extract_strided_slice %197 {offsets = [8, 0], sizes = [2, 128], strides = [1, 1]} : vector<16x128xf32> to vector<2x128xf32>
    %281 = arith.truncf %278 : vector<2x128xf32> to vector<2x128xbf16>
    %cst_140 = arith.constant dense<0.000000e+00> : vector<2x128xf32>
    %282 = tpu.matmul %281, %190, %cst_140 {dimension_numbers = #tpu.dot_dimension_numbers<[1], [0], [0], [1], [0, 0, 1, 1], [], []>} : vector<2x128xbf16>, vector<128x128xbf16>, vector<2x128xf32> -> vector<2x128xf32>
    %283 = arith.addf %280, %282 : vector<2x128xf32>
    %284 = math.tanh %283 : vector<2x128xf32>
    %285 = arith.negf %283 : vector<2x128xf32>
    %286 = math.exp %285 : vector<2x128xf32>
    %cst_141 = arith.constant 1.000000e+00 : f32
    %287 = vector.broadcast %cst_141 : f32 to vector<2x128xf32>
    %288 = arith.addf %287, %286 : vector<2x128xf32>
    %289 = arith.divf %287, %288 : vector<2x128xf32>
    %290 = arith.select %186, %284, %289 : vector<2x128xi1>, vector<2x128xf32>
    %c96_i32_142 = arith.constant 96 : i32
    %291 = tpu.dynamic_rotate %290 by %c96_i32_142 dim 1 : vector<2x128xf32>, i32 -> vector<2x128xf32>
    %c64_i32_143 = arith.constant 64 : i32
    %292 = tpu.dynamic_rotate %290 by %c64_i32_143 dim 1 : vector<2x128xf32>, i32 -> vector<2x128xf32>
    %c32_i32_144 = arith.constant 32 : i32
    %293 = tpu.dynamic_rotate %290 by %c32_i32_144 dim 1 : vector<2x128xf32>, i32 -> vector<2x128xf32>
    %294 = arith.mulf %291, %276 : vector<2x128xf32>
    %295 = arith.mulf %290, %292 : vector<2x128xf32>
    %296 = arith.addf %294, %295 : vector<2x128xf32>
    %297 = math.tanh %296 : vector<2x128xf32>
    %298 = arith.mulf %293, %297 : vector<2x128xf32>
    %c8_145 = arith.constant 8 : index
    %c0_146 = arith.constant 0 : index
    %299 = vector.load %arg8[%c8_145, %c0_146] : memref<16x128xf32, #tpu.memory_space<vmem>>, vector<2x128xf32>
    tpu.vector_store %arg8[%c8_145, %c0_146], %298 {strides = array<i32>} : memref<16x128xf32, #tpu.memory_space<vmem>>, vector<2x128xf32>,
    %300 = vector.extract_strided_slice %197 {offsets = [10, 0], sizes = [2, 128], strides = [1, 1]} : vector<16x128xf32> to vector<2x128xf32>
    %301 = arith.truncf %298 : vector<2x128xf32> to vector<2x128xbf16>
    %cst_147 = arith.constant dense<0.000000e+00> : vector<2x128xf32>
    %302 = tpu.matmul %301, %190, %cst_147 {dimension_numbers = #tpu.dot_dimension_numbers<[1], [0], [0], [1], [0, 0, 1, 1], [], []>} : vector<2x128xbf16>, vector<128x128xbf16>, vector<2x128xf32> -> vector<2x128xf32>
    %303 = arith.addf %300, %302 : vector<2x128xf32>
    %304 = math.tanh %303 : vector<2x128xf32>
    %305 = arith.negf %303 : vector<2x128xf32>
    %306 = math.exp %305 : vector<2x128xf32>
    %cst_148 = arith.constant 1.000000e+00 : f32
    %307 = vector.broadcast %cst_148 : f32 to vector<2x128xf32>
    %308 = arith.addf %307, %306 : vector<2x128xf32>
    %309 = arith.divf %307, %308 : vector<2x128xf32>
    %310 = arith.select %186, %304, %309 : vector<2x128xi1>, vector<2x128xf32>
    %c96_i32_149 = arith.constant 96 : i32
    %311 = tpu.dynamic_rotate %310 by %c96_i32_149 dim 1 : vector<2x128xf32>, i32 -> vector<2x128xf32>
    %c64_i32_150 = arith.constant 64 : i32
    %312 = tpu.dynamic_rotate %310 by %c64_i32_150 dim 1 : vector<2x128xf32>, i32 -> vector<2x128xf32>
    %c32_i32_151 = arith.constant 32 : i32
    %313 = tpu.dynamic_rotate %310 by %c32_i32_151 dim 1 : vector<2x128xf32>, i32 -> vector<2x128xf32>
    %314 = arith.mulf %311, %296 : vector<2x128xf32>
    %315 = arith.mulf %310, %312 : vector<2x128xf32>
    %316 = arith.addf %314, %315 : vector<2x128xf32>
    %317 = math.tanh %316 : vector<2x128xf32>
    %318 = arith.mulf %313, %317 : vector<2x128xf32>
    %c10 = arith.constant 10 : index
    %c0_152 = arith.constant 0 : index
    %319 = vector.load %arg8[%c10, %c0_152] : memref<16x128xf32, #tpu.memory_space<vmem>>, vector<2x128xf32>
    tpu.vector_store %arg8[%c10, %c0_152], %318 {strides = array<i32>} : memref<16x128xf32, #tpu.memory_space<vmem>>, vector<2x128xf32>,
    %320 = vector.extract_strided_slice %197 {offsets = [12, 0], sizes = [2, 128], strides = [1, 1]} : vector<16x128xf32> to vector<2x128xf32>
    %321 = arith.truncf %318 : vector<2x128xf32> to vector<2x128xbf16>
    %cst_153 = arith.constant dense<0.000000e+00> : vector<2x128xf32>
    %322 = tpu.matmul %321, %190, %cst_153 {dimension_numbers = #tpu.dot_dimension_numbers<[1], [0], [0], [1], [0, 0, 1, 1], [], []>} : vector<2x128xbf16>, vector<128x128xbf16>, vector<2x128xf32> -> vector<2x128xf32>
    %323 = arith.addf %320, %322 : vector<2x128xf32>
    %324 = math.tanh %323 : vector<2x128xf32>
    %325 = arith.negf %323 : vector<2x128xf32>
    %326 = math.exp %325 : vector<2x128xf32>
    %cst_154 = arith.constant 1.000000e+00 : f32
    %327 = vector.broadcast %cst_154 : f32 to vector<2x128xf32>
    %328 = arith.addf %327, %326 : vector<2x128xf32>
    %329 = arith.divf %327, %328 : vector<2x128xf32>
    %330 = arith.select %186, %324, %329 : vector<2x128xi1>, vector<2x128xf32>
    %c96_i32_155 = arith.constant 96 : i32
    %331 = tpu.dynamic_rotate %330 by %c96_i32_155 dim 1 : vector<2x128xf32>, i32 -> vector<2x128xf32>
    %c64_i32_156 = arith.constant 64 : i32
    %332 = tpu.dynamic_rotate %330 by %c64_i32_156 dim 1 : vector<2x128xf32>, i32 -> vector<2x128xf32>
    %c32_i32_157 = arith.constant 32 : i32
    %333 = tpu.dynamic_rotate %330 by %c32_i32_157 dim 1 : vector<2x128xf32>, i32 -> vector<2x128xf32>
    %334 = arith.mulf %331, %316 : vector<2x128xf32>
    %335 = arith.mulf %330, %332 : vector<2x128xf32>
    %336 = arith.addf %334, %335 : vector<2x128xf32>
    %337 = math.tanh %336 : vector<2x128xf32>
    %338 = arith.mulf %333, %337 : vector<2x128xf32>
    %c12 = arith.constant 12 : index
    %c0_158 = arith.constant 0 : index
    %339 = vector.load %arg8[%c12, %c0_158] : memref<16x128xf32, #tpu.memory_space<vmem>>, vector<2x128xf32>
    tpu.vector_store %arg8[%c12, %c0_158], %338 {strides = array<i32>} : memref<16x128xf32, #tpu.memory_space<vmem>>, vector<2x128xf32>,
    %340 = vector.extract_strided_slice %197 {offsets = [14, 0], sizes = [2, 128], strides = [1, 1]} : vector<16x128xf32> to vector<2x128xf32>
    %341 = arith.truncf %338 : vector<2x128xf32> to vector<2x128xbf16>
    %cst_159 = arith.constant dense<0.000000e+00> : vector<2x128xf32>
    %342 = tpu.matmul %341, %190, %cst_159 {dimension_numbers = #tpu.dot_dimension_numbers<[1], [0], [0], [1], [0, 0, 1, 1], [], []>} : vector<2x128xbf16>, vector<128x128xbf16>, vector<2x128xf32> -> vector<2x128xf32>
    %343 = arith.addf %340, %342 : vector<2x128xf32>
    %344 = math.tanh %343 : vector<2x128xf32>
    %345 = arith.negf %343 : vector<2x128xf32>
    %346 = math.exp %345 : vector<2x128xf32>
    %cst_160 = arith.constant 1.000000e+00 : f32
    %347 = vector.broadcast %cst_160 : f32 to vector<2x128xf32>
    %348 = arith.addf %347, %346 : vector<2x128xf32>
    %349 = arith.divf %347, %348 : vector<2x128xf32>
    %350 = arith.select %186, %344, %349 : vector<2x128xi1>, vector<2x128xf32>
    %c96_i32_161 = arith.constant 96 : i32
    %351 = tpu.dynamic_rotate %350 by %c96_i32_161 dim 1 : vector<2x128xf32>, i32 -> vector<2x128xf32>
    %c64_i32_162 = arith.constant 64 : i32
    %352 = tpu.dynamic_rotate %350 by %c64_i32_162 dim 1 : vector<2x128xf32>, i32 -> vector<2x128xf32>
    %c32_i32_163 = arith.constant 32 : i32
    %353 = tpu.dynamic_rotate %350 by %c32_i32_163 dim 1 : vector<2x128xf32>, i32 -> vector<2x128xf32>
    %354 = arith.mulf %351, %336 : vector<2x128xf32>
    %355 = arith.mulf %350, %352 : vector<2x128xf32>
    %356 = arith.addf %354, %355 : vector<2x128xf32>
    %357 = math.tanh %356 : vector<2x128xf32>
    %358 = arith.mulf %353, %357 : vector<2x128xf32>
    %c14 = arith.constant 14 : index
    %c0_164 = arith.constant 0 : index
    %359 = vector.load %arg8[%c14, %c0_164] : memref<16x128xf32, #tpu.memory_space<vmem>>, vector<2x128xf32>
    tpu.vector_store %arg8[%c14, %c0_164], %358 {strides = array<i32>} : memref<16x128xf32, #tpu.memory_space<vmem>>, vector<2x128xf32>,
    %c1_165 = arith.constant 1 : index
    %c0_166 = arith.constant 0 : index
    %c0_167 = arith.constant 0 : index
    %360 = vector.load %arg2[%c1_165, %c0_166, %c0_167] : memref<2x128x128xbf16, #tpu.memory_space<vmem>>, vector<1x128x128xbf16>
    %361 = vector.shape_cast %360 : vector<1x128x128xbf16> to vector<128x128xbf16>
    %c1_168 = arith.constant 1 : index
    %c0_169 = arith.constant 0 : index
    %c0_170 = arith.constant 0 : index
    %362 = vector.load %arg3[%c1_168, %c0_169, %c0_170] : memref<2x128x128xbf16, #tpu.memory_space<vmem>>, vector<1x128x128xbf16>
    %363 = vector.shape_cast %362 : vector<1x128x128xbf16> to vector<128x128xbf16>
    %c1_171 = arith.constant 1 : index
    %c0_172 = arith.constant 0 : index
    %c0_173 = arith.constant 0 : index
    %364 = vector.load %arg4[%c1_171, %c0_172, %c0_173] : memref<2x1x128xf32, #tpu.memory_space<vmem>>, vector<1x1x128xf32>
    %365 = vector.shape_cast %364 : vector<1x1x128xf32> to vector<1x128xf32>
    %c0_174 = arith.constant 0 : index
    %c0_175 = arith.constant 0 : index
    %366 = vector.load %arg8[%c0_174, %c0_175] : memref<16x128xf32, #tpu.memory_space<vmem>>, vector<16x128xf32>
    %367 = arith.truncf %366 : vector<16x128xf32> to vector<16x128xbf16>
    %cst_176 = arith.constant dense<0.000000e+00> : vector<16x128xf32>
    %368 = tpu.matmul %367, %361, %cst_176 {dimension_numbers = #tpu.dot_dimension_numbers<[1], [0], [0], [1], [0, 0, 1, 1], [], []>} : vector<16x128xbf16>, vector<128x128xbf16>, vector<16x128xf32> -> vector<16x128xf32>
    %369 = vector.broadcast %365 : vector<1x128xf32> to vector<16x128xf32>
    %370 = arith.addf %368, %369 : vector<16x128xf32>
    %cst_177 = arith.constant 0.000000e+00 : f32
    %371 = vector.broadcast %cst_177 : f32 to vector<2x128xf32>
    %cst_178 = arith.constant 0.000000e+00 : f32
    %372 = vector.broadcast %cst_178 : f32 to vector<2x128xf32>
    %373 = vector.extract_strided_slice %370 {offsets = [0, 0], sizes = [2, 128], strides = [1, 1]} : vector<16x128xf32> to vector<2x128xf32>
    %374 = arith.truncf %371 : vector<2x128xf32> to vector<2x128xbf16>
    %cst_179 = arith.constant dense<0.000000e+00> : vector<2x128xf32>
    %375 = tpu.matmul %374, %363, %cst_179 {dimension_numbers = #tpu.dot_dimension_numbers<[1], [0], [0], [1], [0, 0, 1, 1], [], []>} : vector<2x128xbf16>, vector<128x128xbf16>, vector<2x128xf32> -> vector<2x128xf32>
    %376 = arith.addf %373, %375 : vector<2x128xf32>
    %377 = math.tanh %376 : vector<2x128xf32>
    %378 = arith.negf %376 : vector<2x128xf32>
    %379 = math.exp %378 : vector<2x128xf32>
    %cst_180 = arith.constant 1.000000e+00 : f32
    %380 = vector.broadcast %cst_180 : f32 to vector<2x128xf32>
    %381 = arith.addf %380, %379 : vector<2x128xf32>
    %382 = arith.divf %380, %381 : vector<2x128xf32>
    %383 = arith.select %186, %377, %382 : vector<2x128xi1>, vector<2x128xf32>
    %c96_i32_181 = arith.constant 96 : i32
    %384 = tpu.dynamic_rotate %383 by %c96_i32_181 dim 1 : vector<2x128xf32>, i32 -> vector<2x128xf32>
    %c64_i32_182 = arith.constant 64 : i32
    %385 = tpu.dynamic_rotate %383 by %c64_i32_182 dim 1 : vector<2x128xf32>, i32 -> vector<2x128xf32>
    %c32_i32_183 = arith.constant 32 : i32
    %386 = tpu.dynamic_rotate %383 by %c32_i32_183 dim 1 : vector<2x128xf32>, i32 -> vector<2x128xf32>
    %387 = arith.mulf %384, %372 : vector<2x128xf32>
    %388 = arith.mulf %383, %385 : vector<2x128xf32>
    %389 = arith.addf %387, %388 : vector<2x128xf32>
    %390 = math.tanh %389 : vector<2x128xf32>
    %391 = arith.mulf %386, %390 : vector<2x128xf32>
    %392 = vector.extract_strided_slice %370 {offsets = [2, 0], sizes = [2, 128], strides = [1, 1]} : vector<16x128xf32> to vector<2x128xf32>
    %393 = arith.truncf %391 : vector<2x128xf32> to vector<2x128xbf16>
    %cst_184 = arith.constant dense<0.000000e+00> : vector<2x128xf32>
    %394 = tpu.matmul %393, %363, %cst_184 {dimension_numbers = #tpu.dot_dimension_numbers<[1], [0], [0], [1], [0, 0, 1, 1], [], []>} : vector<2x128xbf16>, vector<128x128xbf16>, vector<2x128xf32> -> vector<2x128xf32>
    %395 = arith.addf %392, %394 : vector<2x128xf32>
    %396 = math.tanh %395 : vector<2x128xf32>
    %397 = arith.negf %395 : vector<2x128xf32>
    %398 = math.exp %397 : vector<2x128xf32>
    %cst_185 = arith.constant 1.000000e+00 : f32
    %399 = vector.broadcast %cst_185 : f32 to vector<2x128xf32>
    %400 = arith.addf %399, %398 : vector<2x128xf32>
    %401 = arith.divf %399, %400 : vector<2x128xf32>
    %402 = arith.select %186, %396, %401 : vector<2x128xi1>, vector<2x128xf32>
    %c96_i32_186 = arith.constant 96 : i32
    %403 = tpu.dynamic_rotate %402 by %c96_i32_186 dim 1 : vector<2x128xf32>, i32 -> vector<2x128xf32>
    %c64_i32_187 = arith.constant 64 : i32
    %404 = tpu.dynamic_rotate %402 by %c64_i32_187 dim 1 : vector<2x128xf32>, i32 -> vector<2x128xf32>
    %c32_i32_188 = arith.constant 32 : i32
    %405 = tpu.dynamic_rotate %402 by %c32_i32_188 dim 1 : vector<2x128xf32>, i32 -> vector<2x128xf32>
    %406 = arith.mulf %403, %389 : vector<2x128xf32>
    %407 = arith.mulf %402, %404 : vector<2x128xf32>
    %408 = arith.addf %406, %407 : vector<2x128xf32>
    %409 = math.tanh %408 : vector<2x128xf32>
    %410 = arith.mulf %405, %409 : vector<2x128xf32>
    %411 = vector.extract_strided_slice %370 {offsets = [4, 0], sizes = [2, 128], strides = [1, 1]} : vector<16x128xf32> to vector<2x128xf32>
    %412 = arith.truncf %410 : vector<2x128xf32> to vector<2x128xbf16>
    %cst_189 = arith.constant dense<0.000000e+00> : vector<2x128xf32>
    %413 = tpu.matmul %412, %363, %cst_189 {dimension_numbers = #tpu.dot_dimension_numbers<[1], [0], [0], [1], [0, 0, 1, 1], [], []>} : vector<2x128xbf16>, vector<128x128xbf16>, vector<2x128xf32> -> vector<2x128xf32>
    %414 = arith.addf %411, %413 : vector<2x128xf32>
    %415 = math.tanh %414 : vector<2x128xf32>
    %416 = arith.negf %414 : vector<2x128xf32>
    %417 = math.exp %416 : vector<2x128xf32>
    %cst_190 = arith.constant 1.000000e+00 : f32
    %418 = vector.broadcast %cst_190 : f32 to vector<2x128xf32>
    %419 = arith.addf %418, %417 : vector<2x128xf32>
    %420 = arith.divf %418, %419 : vector<2x128xf32>
    %421 = arith.select %186, %415, %420 : vector<2x128xi1>, vector<2x128xf32>
    %c96_i32_191 = arith.constant 96 : i32
    %422 = tpu.dynamic_rotate %421 by %c96_i32_191 dim 1 : vector<2x128xf32>, i32 -> vector<2x128xf32>
    %c64_i32_192 = arith.constant 64 : i32
    %423 = tpu.dynamic_rotate %421 by %c64_i32_192 dim 1 : vector<2x128xf32>, i32 -> vector<2x128xf32>
    %c32_i32_193 = arith.constant 32 : i32
    %424 = tpu.dynamic_rotate %421 by %c32_i32_193 dim 1 : vector<2x128xf32>, i32 -> vector<2x128xf32>
    %425 = arith.mulf %422, %408 : vector<2x128xf32>
    %426 = arith.mulf %421, %423 : vector<2x128xf32>
    %427 = arith.addf %425, %426 : vector<2x128xf32>
    %428 = math.tanh %427 : vector<2x128xf32>
    %429 = arith.mulf %424, %428 : vector<2x128xf32>
    %430 = vector.extract_strided_slice %370 {offsets = [6, 0], sizes = [2, 128], strides = [1, 1]} : vector<16x128xf32> to vector<2x128xf32>
    %431 = arith.truncf %429 : vector<2x128xf32> to vector<2x128xbf16>
    %cst_194 = arith.constant dense<0.000000e+00> : vector<2x128xf32>
    %432 = tpu.matmul %431, %363, %cst_194 {dimension_numbers = #tpu.dot_dimension_numbers<[1], [0], [0], [1], [0, 0, 1, 1], [], []>} : vector<2x128xbf16>, vector<128x128xbf16>, vector<2x128xf32> -> vector<2x128xf32>
    %433 = arith.addf %430, %432 : vector<2x128xf32>
    %434 = math.tanh %433 : vector<2x128xf32>
    %435 = arith.negf %433 : vector<2x128xf32>
    %436 = math.exp %435 : vector<2x128xf32>
    %cst_195 = arith.constant 1.000000e+00 : f32
    %437 = vector.broadcast %cst_195 : f32 to vector<2x128xf32>
    %438 = arith.addf %437, %436 : vector<2x128xf32>
    %439 = arith.divf %437, %438 : vector<2x128xf32>
    %440 = arith.select %186, %434, %439 : vector<2x128xi1>, vector<2x128xf32>
    %c96_i32_196 = arith.constant 96 : i32
    %441 = tpu.dynamic_rotate %440 by %c96_i32_196 dim 1 : vector<2x128xf32>, i32 -> vector<2x128xf32>
    %c64_i32_197 = arith.constant 64 : i32
    %442 = tpu.dynamic_rotate %440 by %c64_i32_197 dim 1 : vector<2x128xf32>, i32 -> vector<2x128xf32>
    %c32_i32_198 = arith.constant 32 : i32
    %443 = tpu.dynamic_rotate %440 by %c32_i32_198 dim 1 : vector<2x128xf32>, i32 -> vector<2x128xf32>
    %444 = arith.mulf %441, %427 : vector<2x128xf32>
    %445 = arith.mulf %440, %442 : vector<2x128xf32>
    %446 = arith.addf %444, %445 : vector<2x128xf32>
    %447 = math.tanh %446 : vector<2x128xf32>
    %448 = arith.mulf %443, %447 : vector<2x128xf32>
    %449 = vector.extract_strided_slice %370 {offsets = [8, 0], sizes = [2, 128], strides = [1, 1]} : vector<16x128xf32> to vector<2x128xf32>
    %450 = arith.truncf %448 : vector<2x128xf32> to vector<2x128xbf16>
    %cst_199 = arith.constant dense<0.000000e+00> : vector<2x128xf32>
    %451 = tpu.matmul %450, %363, %cst_199 {dimension_numbers = #tpu.dot_dimension_numbers<[1], [0], [0], [1], [0, 0, 1, 1], [], []>} : vector<2x128xbf16>, vector<128x128xbf16>, vector<2x128xf32> -> vector<2x128xf32>
    %452 = arith.addf %449, %451 : vector<2x128xf32>
    %453 = math.tanh %452 : vector<2x128xf32>
    %454 = arith.negf %452 : vector<2x128xf32>
    %455 = math.exp %454 : vector<2x128xf32>
    %cst_200 = arith.constant 1.000000e+00 : f32
    %456 = vector.broadcast %cst_200 : f32 to vector<2x128xf32>
    %457 = arith.addf %456, %455 : vector<2x128xf32>
    %458 = arith.divf %456, %457 : vector<2x128xf32>
    %459 = arith.select %186, %453, %458 : vector<2x128xi1>, vector<2x128xf32>
    %c96_i32_201 = arith.constant 96 : i32
    %460 = tpu.dynamic_rotate %459 by %c96_i32_201 dim 1 : vector<2x128xf32>, i32 -> vector<2x128xf32>
    %c64_i32_202 = arith.constant 64 : i32
    %461 = tpu.dynamic_rotate %459 by %c64_i32_202 dim 1 : vector<2x128xf32>, i32 -> vector<2x128xf32>
    %c32_i32_203 = arith.constant 32 : i32
    %462 = tpu.dynamic_rotate %459 by %c32_i32_203 dim 1 : vector<2x128xf32>, i32 -> vector<2x128xf32>
    %463 = arith.mulf %460, %446 : vector<2x128xf32>
    %464 = arith.mulf %459, %461 : vector<2x128xf32>
    %465 = arith.addf %463, %464 : vector<2x128xf32>
    %466 = math.tanh %465 : vector<2x128xf32>
    %467 = arith.mulf %462, %466 : vector<2x128xf32>
    %468 = vector.extract_strided_slice %370 {offsets = [10, 0], sizes = [2, 128], strides = [1, 1]} : vector<16x128xf32> to vector<2x128xf32>
    %469 = arith.truncf %467 : vector<2x128xf32> to vector<2x128xbf16>
    %cst_204 = arith.constant dense<0.000000e+00> : vector<2x128xf32>
    %470 = tpu.matmul %469, %363, %cst_204 {dimension_numbers = #tpu.dot_dimension_numbers<[1], [0], [0], [1], [0, 0, 1, 1], [], []>} : vector<2x128xbf16>, vector<128x128xbf16>, vector<2x128xf32> -> vector<2x128xf32>
    %471 = arith.addf %468, %470 : vector<2x128xf32>
    %472 = math.tanh %471 : vector<2x128xf32>
    %473 = arith.negf %471 : vector<2x128xf32>
    %474 = math.exp %473 : vector<2x128xf32>
    %cst_205 = arith.constant 1.000000e+00 : f32
    %475 = vector.broadcast %cst_205 : f32 to vector<2x128xf32>
    %476 = arith.addf %475, %474 : vector<2x128xf32>
    %477 = arith.divf %475, %476 : vector<2x128xf32>
    %478 = arith.select %186, %472, %477 : vector<2x128xi1>, vector<2x128xf32>
    %c96_i32_206 = arith.constant 96 : i32
    %479 = tpu.dynamic_rotate %478 by %c96_i32_206 dim 1 : vector<2x128xf32>, i32 -> vector<2x128xf32>
    %c64_i32_207 = arith.constant 64 : i32
    %480 = tpu.dynamic_rotate %478 by %c64_i32_207 dim 1 : vector<2x128xf32>, i32 -> vector<2x128xf32>
    %c32_i32_208 = arith.constant 32 : i32
    %481 = tpu.dynamic_rotate %478 by %c32_i32_208 dim 1 : vector<2x128xf32>, i32 -> vector<2x128xf32>
    %482 = arith.mulf %479, %465 : vector<2x128xf32>
    %483 = arith.mulf %478, %480 : vector<2x128xf32>
    %484 = arith.addf %482, %483 : vector<2x128xf32>
    %485 = math.tanh %484 : vector<2x128xf32>
    %486 = arith.mulf %481, %485 : vector<2x128xf32>
    %487 = vector.extract_strided_slice %370 {offsets = [12, 0], sizes = [2, 128], strides = [1, 1]} : vector<16x128xf32> to vector<2x128xf32>
    %488 = arith.truncf %486 : vector<2x128xf32> to vector<2x128xbf16>
    %cst_209 = arith.constant dense<0.000000e+00> : vector<2x128xf32>
    %489 = tpu.matmul %488, %363, %cst_209 {dimension_numbers = #tpu.dot_dimension_numbers<[1], [0], [0], [1], [0, 0, 1, 1], [], []>} : vector<2x128xbf16>, vector<128x128xbf16>, vector<2x128xf32> -> vector<2x128xf32>
    %490 = arith.addf %487, %489 : vector<2x128xf32>
    %491 = math.tanh %490 : vector<2x128xf32>
    %492 = arith.negf %490 : vector<2x128xf32>
    %493 = math.exp %492 : vector<2x128xf32>
    %cst_210 = arith.constant 1.000000e+00 : f32
    %494 = vector.broadcast %cst_210 : f32 to vector<2x128xf32>
    %495 = arith.addf %494, %493 : vector<2x128xf32>
    %496 = arith.divf %494, %495 : vector<2x128xf32>
    %497 = arith.select %186, %491, %496 : vector<2x128xi1>, vector<2x128xf32>
    %c96_i32_211 = arith.constant 96 : i32
    %498 = tpu.dynamic_rotate %497 by %c96_i32_211 dim 1 : vector<2x128xf32>, i32 -> vector<2x128xf32>
    %c64_i32_212 = arith.constant 64 : i32
    %499 = tpu.dynamic_rotate %497 by %c64_i32_212 dim 1 : vector<2x128xf32>, i32 -> vector<2x128xf32>
    %c32_i32_213 = arith.constant 32 : i32
    %500 = tpu.dynamic_rotate %497 by %c32_i32_213 dim 1 : vector<2x128xf32>, i32 -> vector<2x128xf32>
    %501 = arith.mulf %498, %484 : vector<2x128xf32>
    %502 = arith.mulf %497, %499 : vector<2x128xf32>
    %503 = arith.addf %501, %502 : vector<2x128xf32>
    %504 = math.tanh %503 : vector<2x128xf32>
    %505 = arith.mulf %500, %504 : vector<2x128xf32>
    %506 = vector.extract_strided_slice %370 {offsets = [14, 0], sizes = [2, 128], strides = [1, 1]} : vector<16x128xf32> to vector<2x128xf32>
    %507 = arith.truncf %505 : vector<2x128xf32> to vector<2x128xbf16>
    %cst_214 = arith.constant dense<0.000000e+00> : vector<2x128xf32>
    %508 = tpu.matmul %507, %363, %cst_214 {dimension_numbers = #tpu.dot_dimension_numbers<[1], [0], [0], [1], [0, 0, 1, 1], [], []>} : vector<2x128xbf16>, vector<128x128xbf16>, vector<2x128xf32> -> vector<2x128xf32>
    %509 = arith.addf %506, %508 : vector<2x128xf32>
    %510 = math.tanh %509 : vector<2x128xf32>
    %511 = arith.negf %509 : vector<2x128xf32>
    %512 = math.exp %511 : vector<2x128xf32>
    %cst_215 = arith.constant 1.000000e+00 : f32
    %513 = vector.broadcast %cst_215 : f32 to vector<2x128xf32>
    %514 = arith.addf %513, %512 : vector<2x128xf32>
    %515 = arith.divf %513, %514 : vector<2x128xf32>
    %516 = arith.select %186, %510, %515 : vector<2x128xi1>, vector<2x128xf32>
    %c96_i32_216 = arith.constant 96 : i32
    %517 = tpu.dynamic_rotate %516 by %c96_i32_216 dim 1 : vector<2x128xf32>, i32 -> vector<2x128xf32>
    %c64_i32_217 = arith.constant 64 : i32
    %518 = tpu.dynamic_rotate %516 by %c64_i32_217 dim 1 : vector<2x128xf32>, i32 -> vector<2x128xf32>
    %c32_i32_218 = arith.constant 32 : i32
    %519 = tpu.dynamic_rotate %516 by %c32_i32_218 dim 1 : vector<2x128xf32>, i32 -> vector<2x128xf32>
    %520 = arith.mulf %517, %503 : vector<2x128xf32>
    %521 = arith.mulf %516, %518 : vector<2x128xf32>
    %522 = arith.addf %520, %521 : vector<2x128xf32>
    %523 = math.tanh %522 : vector<2x128xf32>
    %524 = arith.mulf %519, %523 : vector<2x128xf32>
    %525 = arith.truncf %524 : vector<2x128xf32> to vector<2x128xbf16>
    %c0_219 = arith.constant 0 : index
    %c0_220 = arith.constant 0 : index
    %526 = vector.load %arg5[%c0_219, %c0_220] : memref<128x3xbf16, #tpu.memory_space<vmem>>, vector<128x3xbf16>
    %cst_221 = arith.constant dense<0.000000e+00> : vector<2x3xf32>
    %527 = tpu.matmul %525, %526, %cst_221 {dimension_numbers = #tpu.dot_dimension_numbers<[1], [0], [0], [1], [0, 0, 1, 1], [], []>} : vector<2x128xbf16>, vector<128x3xbf16>, vector<2x3xf32> -> vector<2x3xf32>
    %c0_222 = arith.constant 0 : index
    %c0_223 = arith.constant 0 : index
    %528 = vector.load %arg6[%c0_222, %c0_223] : memref<1x3xf32, #tpu.memory_space<vmem>>, vector<1x3xf32>
    %529 = vector.broadcast %528 : vector<1x3xf32> to vector<2x3xf32>
    %530 = arith.addf %527, %529 : vector<2x3xf32>
    %c0_224 = arith.constant 0 : index
    %c0_225 = arith.constant 0 : index
    %531 = vector.load %arg7[%c0_224, %c0_225] : memref<2x3xf32, #tpu.memory_space<vmem>>, vector<2x3xf32>
    tpu.vector_store %arg7[%c0_224, %c0_225], %530 {strides = array<i32>} : memref<2x3xf32, #tpu.memory_space<vmem>>, vector<2x3xf32>,
    return
  }
}

</mosaic_0001>

<llo_original>
// kernel: sentiment_lstm_forward.1
$region0: #{sentiment_lstm_forward.1}
  #allocation0 [shape = 'u32[]', space=smem, size = 0x4, offset = 0x4, fixed_abs, tag = 'smem constant byte address 0x4 - core index']
  #allocation1 [shape = 'u32[144,128]{1,0:T(1,128)}', space=vmem, size = 0x12000, scoped, tag = 'internal scratch']
  #allocation2 [shape = 'f32[16,128]{1,0:T(8,128)}', space=vmem, size = 0x2000, scoped, tag = 'scratch operand']
  %s0 = inlined_call_operand.vmem [shape: s32[2,8], index: 0, kind: input, shape index: {}]
  %s1 = inlined_call_operand.vmem [shape: f32[50,1,128], index: 1, kind: input, shape index: {}]
  %s2 = inlined_call_operand.hbm [shape: bf16[2,128,128], index: 2, kind: input, shape index: {}]
  %s3 = inlined_call_operand.hbm [shape: bf16[2,128,128], index: 3, kind: input, shape index: {}]
  %s4 = inlined_call_operand.vmem [shape: f32[2,1,128], index: 4, kind: input, shape index: {}]
  %s5 = inlined_call_operand.vmem [shape: bf16[128,3], index: 5, kind: input, shape index: {}]
  %s6 = inlined_call_operand.vmem [shape: f32[1,3], index: 6, kind: input, shape index: {}]
  %s7 = inlined_call_operand.hbm [shape: f32[2,3], index: 7, kind: output, shape index: {}]
  %s8 = sld [smem:[#allocation0]]
  $region50: #{sentiment_lstm_forward.1} parent=0
    _
  %s10 = ssub.s32 1, %s8
  %s11 = scalar_select 0, %s10, %s8
  $region1: #{sentiment_lstm_forward.1} parent=0
    #allocation3 [shape = 'u8[1024]{0}', space=smem, size = 0x400, scoped, tag = 'input window, operand 0, single buffered']
    #allocation4 [shape = 's32[1]{0}', space=sflag, size = 0x4, scoped, tag = 'scoped memory for sentiment_lstm_forward.1']
    #allocation5 [shape = 's32[1]{0}', space=sflag, size = 0x4, scoped, tag = 'scoped memory for sentiment_lstm_forward.1']
    #allocation6 [shape = 's32[1]{0}', space=sflag, size = 0x4, scoped, tag = 'scoped memory for sentiment_lstm_forward.1']
    #allocation7 [shape = 'u8[65536]{0}', space=vmem, size = 0x10000, scoped, tag = 'input window, operand 2, single buffered']
    #allocation8 [shape = 'u8[65536]{0}', space=vmem, size = 0x10000, scoped, tag = 'input window, operand 3, single buffered']
    #allocation9 [shape = 's32[1]{0}', space=sflag, size = 0x4, scoped, tag = 'scoped memory for sentiment_lstm_forward.1']
    #allocation10 [shape = 'u8[1024]{0}', space=vmem, size = 0x400, scoped, tag = 'output window, operand 0, single buffered']
    %12 = vsyncpa [#allocation6], 0
    %13 = vsyncpa [#allocation4], 0
    %14 = vsyncpa [#allocation9], 0
    %15 = vsyncpa [#allocation5], 0
    // Predicated region
    $region2: #{sentiment_lstm_forward.1} parent=1 // pred_check
      _
    $region3: #{sentiment_lstm_forward.1} parent=1 // pred_check_branch
      %17 = sbr.rel (0) target = $region5
    $region4: #{sentiment_lstm_forward.1} parent=1 // pred_region
      %s19 = ssub.s32 32, 32
      %20 = vsyncadd [#allocation6], %s19
      %s22 = sshll.u32 %s0, 4
      %s23 = int_to_ptr.vmem [resolvable:$true] %s22
      %25 = dma.vmem_to_smem %s23, 32, [#allocation3], [#allocation6]
    $region5: #{sentiment_lstm_forward.1} parent=1 // pred_fallthru
      _
    // Predicated region
    $region6: #{sentiment_lstm_forward.1} parent=1 // pred_check
      _
    $region7: #{sentiment_lstm_forward.1} parent=1 // pred_check_branch
      %27 = sbr.rel (0) target = $region9
    $region8: #{sentiment_lstm_forward.1} parent=1 // pred_region
      _
    $region9: #{sentiment_lstm_forward.1} parent=1 // pred_fallthru
      _
    // Predicated region
    $region10: #{sentiment_lstm_forward.1} parent=1 // pred_check
      _
    $region11: #{sentiment_lstm_forward.1} parent=1 // pred_check_branch
      %29 = sbr.rel (0) target = $region13
    $region12: #{sentiment_lstm_forward.1} parent=1 // pred_region
      %s31 = ssub.s32 2048, 2048
      %32 = vsyncadd [#allocation4], %s31
      %s33 = sshll.u32 [#allocation7], 4
      %s34 = int_to_ptr.vmem [resolvable:$true] %s33
      %39 = dma.hbm_to_vmem [thread:$0]  %s2, 2048, %s34, [#allocation4], 64, 64, 4
    $region13: #{sentiment_lstm_forward.1} parent=1 // pred_fallthru
      _
    // Predicated region
    $region14: #{sentiment_lstm_forward.1} parent=1 // pred_check
      _
    $region15: #{sentiment_lstm_forward.1} parent=1 // pred_check_branch
      %41 = sbr.rel (0) target = $region17
    $region16: #{sentiment_lstm_forward.1} parent=1 // pred_region
      %s43 = ssub.s32 2048, 2048
      %44 = vsyncadd [#allocation9], %s43
      %s45 = sshll.u32 [#allocation8], 4
      %s46 = int_to_ptr.vmem [resolvable:$true] %s45
      %51 = dma.hbm_to_vmem [thread:$0]  %s3, 2048, %s46, [#allocation9], 64, 64, 4
    $region17: #{sentiment_lstm_forward.1} parent=1 // pred_fallthru
      _
    // Predicated region
    $region18: #{sentiment_lstm_forward.1} parent=1 // pred_check
      _
    $region19: #{sentiment_lstm_forward.1} parent=1 // pred_check_branch
      %53 = sbr.rel (0) target = $region21
    $region20: #{sentiment_lstm_forward.1} parent=1 // pred_region
      _
    $region21: #{sentiment_lstm_forward.1} parent=1 // pred_fallthru
      _
    // Predicated region
    $region22: #{sentiment_lstm_forward.1} parent=1 // pred_check
      _
    $region23: #{sentiment_lstm_forward.1} parent=1 // pred_check_branch
      %55 = sbr.rel (0) target = $region25
    $region24: #{sentiment_lstm_forward.1} parent=1 // pred_region
      _
    $region25: #{sentiment_lstm_forward.1} parent=1 // pred_fallthru
      _
    // Predicated region
    $region26: #{sentiment_lstm_forward.1} parent=1 // pred_check
      _
    $region27: #{sentiment_lstm_forward.1} parent=1 // pred_check_branch
      %57 = sbr.rel (0) target = $region29
    $region28: #{sentiment_lstm_forward.1} parent=1 // pred_region
      _
    $region29: #{sentiment_lstm_forward.1} parent=1 // pred_fallthru
      _
    // Predicated region
    $region30: #{sentiment_lstm_forward.1} parent=1 // pred_check
      _
    $region31: #{sentiment_lstm_forward.1} parent=1 // pred_check_branch
      %59 = sbr.rel (0) target = $region33
    $region32: #{sentiment_lstm_forward.1} parent=1 // pred_region
      %60 = dma.done [#allocation6], 32
    $region33: #{sentiment_lstm_forward.1} parent=1 // pred_fallthru
      _
    // Predicated region
    $region34: #{sentiment_lstm_forward.1} parent=1 // pred_check
      _
    $region35: #{sentiment_lstm_forward.1} parent=1 // pred_check_branch
      %62 = sbr.rel (0) target = $region37
    $region36: #{sentiment_lstm_forward.1} parent=1 // pred_region
      %63 = dma.done [#allocation4], 2048
    $region37: #{sentiment_lstm_forward.1} parent=1 // pred_fallthru
      _
    // Predicated region
    $region38: #{sentiment_lstm_forward.1} parent=1 // pred_check
      _
    $region39: #{sentiment_lstm_forward.1} parent=1 // pred_check_branch
      %65 = sbr.rel (0) target = $region41
    $region40: #{sentiment_lstm_forward.1} parent=1 // pred_region
      %66 = dma.done [#allocation9], 2048
    $region41: #{sentiment_lstm_forward.1} parent=1 // pred_fallthru
      _
    %67 = sfence
    %v69 = vlaneseq
    %v70 = vshrl.u32 %v69, 7
    %s71 = sld [smem:[#allocation3]]
    %p72 = scmp.gt.s32.totalorder %s71, 0
    %s73 = scalar_select %p72, %s71, 0
    %p74 = scmp.lt.s32.totalorder %s73, 49
    %s75 = scalar_select %p74, %s73, 49
    %s76 = scalar_lea.vmem %s1, %s75
    %v77 = vld [vmem:[%s76] sm:$0x1]
    %v79 = vlaneseq
    %v80 = vshrl.u32 %v79, 7
    %v81 = vsub.s32 0, %v80
    %v82 = vrot.slane %v77, %v81
    %vm84 = vcmp.eq.s32.totalorder %v70, 0
    %v85 = vsel %vm84, %v82, 0.0
    %s86 = sld [smem:[#allocation3 + $0x80]]
    %p87 = scmp.gt.s32.totalorder %s86, 0
    %s88 = scalar_select %p87, %s86, 0
    %p89 = scmp.lt.s32.totalorder %s88, 49
    %s90 = scalar_select %p89, %s88, 49
    %s91 = scalar_lea.vmem %s1, %s90
    %v92 = vld [vmem:[%s91] sm:$0x1]
    %v94 = vlaneseq
    %v95 = vshrl.u32 %v94, 7
    %v96 = vsub.s32 0, %v95
    %v97 = vrot.slane %v92, %v96
    %vm99 = vcmp.eq.s32.totalorder %v70, 1
    %v100 = vsel %vm99, %v97, %v85
    %s101 = sld [smem:[#allocation3 + $0x1]]
    %p102 = scmp.gt.s32.totalorder %s101, 0
    %s103 = scalar_select %p102, %s101, 0
    %p104 = scmp.lt.s32.totalorder %s103, 49
    %s105 = scalar_select %p104, %s103, 49
    %s106 = scalar_lea.vmem %s1, %s105
    %v107 = vld [vmem:[%s106] sm:$0x1]
    %v109 = vlaneseq
    %v110 = vshrl.u32 %v109, 7
    %v111 = vsub.s32 0, %v110
    %v112 = vrot.slane %v107, %v111
    %vm114 = vcmp.eq.s32.totalorder %v70, 2
    %v115 = vsel %vm114, %v112, %v100
    %s116 = sld [smem:[#allocation3 + $0x81]]
    %p117 = scmp.gt.s32.totalorder %s116, 0
    %s118 = scalar_select %p117, %s116, 0
    %p119 = scmp.lt.s32.totalorder %s118, 49
    %s120 = scalar_select %p119, %s118, 49
    %s121 = scalar_lea.vmem %s1, %s120
    %v122 = vld [vmem:[%s121] sm:$0x1]
    %v124 = vlaneseq
    %v125 = vshrl.u32 %v124, 7
    %v126 = vsub.s32 0, %v125
    %v127 = vrot.slane %v122, %v126
    %vm129 = vcmp.eq.s32.totalorder %v70, 3
    %v130 = vsel %vm129, %v127, %v115
    %s131 = sld [smem:[#allocation3 + $0x2]]
    %p132 = scmp.gt.s32.totalorder %s131, 0
    %s133 = scalar_select %p132, %s131, 0
    %p134 = scmp.lt.s32.totalorder %s133, 49
    %s135 = scalar_select %p134, %s133, 49
    %s136 = scalar_lea.vmem %s1, %s135
    %v137 = vld [vmem:[%s136] sm:$0x1]
    %v139 = vlaneseq
    %v140 = vshrl.u32 %v139, 7
    %v141 = vsub.s32 0, %v140
    %v142 = vrot.slane %v137, %v141
    %vm144 = vcmp.eq.s32.totalorder %v70, 4
    %v145 = vsel %vm144, %v142, %v130
    %s146 = sld [smem:[#allocation3 + $0x82]]
    %p147 = scmp.gt.s32.totalorder %s146, 0
    %s148 = scalar_select %p147, %s146, 0
    %p149 = scmp.lt.s32.totalorder %s148, 49
    %s150 = scalar_select %p149, %s148, 49
    %s151 = scalar_lea.vmem %s1, %s150
    %v152 = vld [vmem:[%s151] sm:$0x1]
    %v154 = vlaneseq
    %v155 = vshrl.u32 %v154, 7
    %v156 = vsub.s32 0, %v155
    %v157 = vrot.slane %v152, %v156
    %vm159 = vcmp.eq.s32.totalorder %v70, 5
    %v160 = vsel %vm159, %v157, %v145
    %s161 = sld [smem:[#allocation3 + $0x3]]
    %p162 = scmp.gt.s32.totalorder %s161, 0
    %s163 = scalar_select %p162, %s161, 0
    %p164 = scmp.lt.s32.totalorder %s163, 49
    %s165 = scalar_select %p164, %s163, 49
    %s166 = scalar_lea.vmem %s1, %s165
    %v167 = vld [vmem:[%s166] sm:$0x1]
    %v169 = vlaneseq
    %v170 = vshrl.u32 %v169, 7
    %v171 = vsub.s32 0, %v170
    %v172 = vrot.slane %v167, %v171
    %vm174 = vcmp.eq.s32.totalorder %v70, 6
    %v175 = vsel %vm174, %v172, %v160
    %s176 = sld [smem:[#allocation3 + $0x83]]
    %p177 = scmp.gt.s32.totalorder %s176, 0
    %s178 = scalar_select %p177, %s176, 0
    %p179 = scmp.lt.s32.totalorder %s178, 49
    %s180 = scalar_select %p179, %s178, 49
    %s181 = scalar_lea.vmem %s1, %s180
    %v182 = vld [vmem:[%s181] sm:$0x1]
    %v184 = vlaneseq
    %v185 = vshrl.u32 %v184, 7
    %v186 = vsub.s32 0, %v185
    %v187 = vrot.slane %v182, %v186
    %vm189 = vcmp.eq.s32.totalorder %v70, 7
    %v190 = vsel %vm189, %v187, %v175
    %191 = vst [vmem:[#allocation2] sm:$0xff] %v190
    %s192 = sld [smem:[#allocation3 + $0x4]]
    %p193 = scmp.gt.s32.totalorder %s192, 0
    %s194 = scalar_select %p193, %s192, 0
    %p195 = scmp.lt.s32.totalorder %s194, 49
    %s196 = scalar_select %p195, %s194, 49
    %s197 = scalar_lea.vmem %s1, %s196
    %v198 = vld [vmem:[%s197] sm:$0x1]
    %v200 = vlaneseq
    %v201 = vshrl.u32 %v200, 7
    %v202 = vsub.s32 0, %v201
    %v203 = vrot.slane %v198, %v202
    %v205 = vsel %vm84, %v203, 0.0
    %s206 = sld [smem:[#allocation3 + $0x84]]
    %p207 = scmp.gt.s32.totalorder %s206, 0
    %s208 = scalar_select %p207, %s206, 0
    %p209 = scmp.lt.s32.totalorder %s208, 49
    %s210 = scalar_select %p209, %s208, 49
    %s211 = scalar_lea.vmem %s1, %s210
    %v212 = vld [vmem:[%s211] sm:$0x1]
    %v214 = vlaneseq
    %v215 = vshrl.u32 %v214, 7
    %v216 = vsub.s32 0, %v215
    %v217 = vrot.slane %v212, %v216
    %v219 = vsel %vm99, %v217, %v205
    %s220 = sld [smem:[#allocation3 + $0x5]]
    %p221 = scmp.gt.s32.totalorder %s220, 0
    %s222 = scalar_select %p221, %s220, 0
    %p223 = scmp.lt.s32.totalorder %s222, 49
    %s224 = scalar_select %p223, %s222, 49
    %s225 = scalar_lea.vmem %s1, %s224
    %v226 = vld [vmem:[%s225] sm:$0x1]
    %v228 = vlaneseq
    %v229 = vshrl.u32 %v228, 7
    %v230 = vsub.s32 0, %v229
    %v231 = vrot.slane %v226, %v230
    %v233 = vsel %vm114, %v231, %v219
    %s234 = sld [smem:[#allocation3 + $0x85]]
    %p235 = scmp.gt.s32.totalorder %s234, 0
    %s236 = scalar_select %p235, %s234, 0
    %p237 = scmp.lt.s32.totalorder %s236, 49
    %s238 = scalar_select %p237, %s236, 49
    %s239 = scalar_lea.vmem %s1, %s238
    %v240 = vld [vmem:[%s239] sm:$0x1]
    %v242 = vlaneseq
    %v243 = vshrl.u32 %v242, 7
    %v244 = vsub.s32 0, %v243
    %v245 = vrot.slane %v240, %v244
    %v247 = vsel %vm129, %v245, %v233
    %s248 = sld [smem:[#allocation3 + $0x6]]
    %p249 = scmp.gt.s32.totalorder %s248, 0
    %s250 = scalar_select %p249, %s248, 0
    %p251 = scmp.lt.s32.totalorder %s250, 49
    %s252 = scalar_select %p251, %s250, 49
    %s253 = scalar_lea.vmem %s1, %s252
    %v254 = vld [vmem:[%s253] sm:$0x1]
    %v256 = vlaneseq
    %v257 = vshrl.u32 %v256, 7
    %v258 = vsub.s32 0, %v257
    %v259 = vrot.slane %v254, %v258
    %v261 = vsel %vm144, %v259, %v247
    %s262 = sld [smem:[#allocation3 + $0x86]]
    %p263 = scmp.gt.s32.totalorder %s262, 0
    %s264 = scalar_select %p263, %s262, 0
    %p265 = scmp.lt.s32.totalorder %s264, 49
    %s266 = scalar_select %p265, %s264, 49
    %s267 = scalar_lea.vmem %s1, %s266
    %v268 = vld [vmem:[%s267] sm:$0x1]
    %v270 = vlaneseq
    %v271 = vshrl.u32 %v270, 7
    %v272 = vsub.s32 0, %v271
    %v273 = vrot.slane %v268, %v272
    %v275 = vsel %vm159, %v273, %v261
    %s276 = sld [smem:[#allocation3 + $0x7]]
    %p277 = scmp.gt.s32.totalorder %s276, 0
    %s278 = scalar_select %p277, %s276, 0
    %p279 = scmp.lt.s32.totalorder %s278, 49
    %s280 = scalar_select %p279, %s278, 49
    %s281 = scalar_lea.vmem %s1, %s280
    %v282 = vld [vmem:[%s281] sm:$0x1]
    %v284 = vlaneseq
    %v285 = vshrl.u32 %v284, 7
    %v286 = vsub.s32 0, %v285
    %v287 = vrot.slane %v282, %v286
    %v289 = vsel %vm174, %v287, %v275
    %s290 = sld [smem:[#allocation3 + $0x87]]
    %p291 = scmp.gt.s32.totalorder %s290, 0
    %s292 = scalar_select %p291, %s290, 0
    %p293 = scmp.lt.s32.totalorder %s292, 49
    %s294 = scalar_select %p293, %s292, 49
    %s295 = scalar_lea.vmem %s1, %s294
    %v296 = vld [vmem:[%s295] sm:$0x1]
    %v298 = vlaneseq
    %v299 = vshrl.u32 %v298, 7
    %v300 = vsub.s32 0, %v299
    %v301 = vrot.slane %v296, %v300
    %v303 = vsel %vm189, %v301, %v289
    %304 = vst [vmem:[#allocation2 + $0x8] sm:$0xff] %v303
    %v305 = vlaneseq
    %v306 = vand.u32 %v305, 127
    %vm307 = vcmp.ge.s32.totalorder %v306, 64
    %vm308 = vcmp.lt.s32.totalorder %v306, 96
    %vm309 = vmand %vm307, %vm308
    %v310 = vld [vmem:[#allocation7] sm:$0xf]
    %v311 = vld [vmem:[#allocation7 + $0x4] sm:$0xf]
    %v312 = vld [vmem:[#allocation7 + $0x8] sm:$0xf]
    %v313 = vld [vmem:[#allocation7 + $0xc] sm:$0xf]
    %v314 = vld [vmem:[#allocation7 + $0x10] sm:$0xf]
    %v315 = vld [vmem:[#allocation7 + $0x14] sm:$0xf]
    %v316 = vld [vmem:[#allocation7 + $0x18] sm:$0xf]
    %v317 = vld [vmem:[#allocation7 + $0x1c] sm:$0xf]
    %v318 = vld [vmem:[#allocation7 + $0x20] sm:$0xf]
    %v319 = vld [vmem:[#allocation7 + $0x24] sm:$0xf]
    %v320 = vld [vmem:[#allocation7 + $0x28] sm:$0xf]
    %v321 = vld [vmem:[#allocation7 + $0x2c] sm:$0xf]
    %v322 = vld [vmem:[#allocation7 + $0x30] sm:$0xf]
    %v323 = vld [vmem:[#allocation7 + $0x34] sm:$0xf]
    %v324 = vld [vmem:[#allocation7 + $0x38] sm:$0xf]
    %v325 = vld [vmem:[#allocation7 + $0x3c] sm:$0xf]
    %v326 = vld [vmem:[#allocation8] sm:$0xf]
    %v327 = vld [vmem:[#allocation8 + $0x4] sm:$0xf]
    %v328 = vld [vmem:[#allocation8 + $0x8] sm:$0xf]
    %v329 = vld [vmem:[#allocation8 + $0xc] sm:$0xf]
    %v330 = vld [vmem:[#allocation8 + $0x10] sm:$0xf]
    %v331 = vld [vmem:[#allocation8 + $0x14] sm:$0xf]
    %v332 = vld [vmem:[#allocation8 + $0x18] sm:$0xf]
    %v333 = vld [vmem:[#allocation8 + $0x1c] sm:$0xf]
    %v334 = vld [vmem:[#allocation8 + $0x20] sm:$0xf]
    %v335 = vld [vmem:[#allocation8 + $0x24] sm:$0xf]
    %v336 = vld [vmem:[#allocation8 + $0x28] sm:$0xf]
    %v337 = vld [vmem:[#allocation8 + $0x2c] sm:$0xf]
    %v338 = vld [vmem:[#allocation8 + $0x30] sm:$0xf]
    %v339 = vld [vmem:[#allocation8 + $0x34] sm:$0xf]
    %v340 = vld [vmem:[#allocation8 + $0x38] sm:$0xf]
    %v341 = vld [vmem:[#allocation8 + $0x3c] sm:$0xf]
    %v342 = vld [vmem:[%s4] sm:$0x1]
    %v343 = vld [vmem:[#allocation2] sm:$0xff]
    %v344 = vld [vmem:[#allocation2 + $0x8] sm:$0xff]
    %v345 = vpack.c.bf16 %v344, %v343
    %v347 = vlaneseq
    %v348 = vshrl.u32 %v347, 7
    %v349 = vsub.s32 0, %v348
    %v350 = vrot.slane %v342, %v349
    %v368 = vunpack.c.l.b16 %v310
    %v369 = vunpack.c.l.b16 %v311
    %v370 = vunpack.c.l.b16 %v312
    %v371 = vunpack.c.l.b16 %v313
    %v372 = vunpack.c.l.b16 %v314
    %v373 = vunpack.c.l.b16 %v315
    %v374 = vunpack.c.l.b16 %v316
    %v375 = vunpack.c.l.b16 %v317
    %v376 = vunpack.c.l.b16 %v318
    %v377 = vunpack.c.l.b16 %v319
    %v378 = vunpack.c.l.b16 %v320
    %v379 = vunpack.c.l.b16 %v321
    %v380 = vunpack.c.l.b16 %v322
    %v381 = vunpack.c.l.b16 %v323
    %v382 = vunpack.c.l.b16 %v324
    %v383 = vunpack.c.l.b16 %v325
    %v384 = vpack.c.b16 %v369, %v368
    %v385 = vpack.c.b16 %v371, %v370
    %v386 = vpack.c.b16 %v373, %v372
    %v387 = vpack.c.b16 %v375, %v374
    %v388 = vpack.c.b16 %v377, %v376
    %v389 = vpack.c.b16 %v379, %v378
    %v390 = vpack.c.b16 %v381, %v380
    %v391 = vpack.c.b16 %v383, %v382
    %400 = vmatprep.subr.bf16.mxu0 0
    %401 = vmatpush1.bf16.msra.mxu0 %v384
    %402 = vmatprep.subr.bf16.mxu0 0
    %403 = vmatpush1.bf16.msra.mxu0 %v385
    %404 = vmatprep.subr.bf16.mxu0 0
    %405 = vmatpush1.bf16.msra.mxu0 %v386
    %406 = vmatprep.subr.bf16.mxu0 0
    %407 = vmatpush1.bf16.msra.mxu0 %v387
    %408 = vmatprep.subr.bf16.mxu0 0
    %409 = vmatpush1.bf16.msra.mxu0 %v388
    %410 = vmatprep.subr.bf16.mxu0 0
    %411 = vmatpush1.bf16.msra.mxu0 %v389
    %412 = vmatprep.subr.bf16.mxu0 0
    %413 = vmatpush1.bf16.msra.mxu0 %v390
    %414 = vmatprep.subr.bf16.mxu0 0
    %415 = vmatpush1.bf16.msra.mxu0 %v391
    %416 = vmatprep.subr.bf16.mxu0 0
    %417 = vmatpush1.bf16.msra.mxu0 0
    %418 = vmatprep.subr.bf16.mxu0 0
    %419 = vmatpush1.bf16.msra.mxu0 0
    %420 = vmatprep.subr.bf16.mxu0 0
    %421 = vmatpush1.bf16.msra.mxu0 0
    %422 = vmatprep.subr.bf16.mxu0 0
    %423 = vmatpush1.bf16.msra.mxu0 0
    %424 = vmatprep.subr.bf16.mxu0 0
    %425 = vmatpush1.bf16.msra.mxu0 0
    %426 = vmatprep.subr.bf16.mxu0 0
    %427 = vmatpush1.bf16.msra.mxu0 0
    %428 = vmatprep.subr.bf16.mxu0 0
    %429 = vmatpush1.bf16.msra.mxu0 0
    %430 = vmatprep.subr.bf16.mxu0 0
    %431 = vmatpush1.bf16.msra.mxu0 0
    %432 = vmatprep.mubr.bf16.mxu0 0
    %433 = vmatmul.mubr.bf16.gmra.mrb[0].mxu0 %v345
    %v434 = vpop.f32.mrb[0].mxu0
    %v435 = vadd.f32 %v350, %v434
    %v436 = vpop.f32.mrb[0].mxu0
    %v437 = vpop.f32.mrb[0].mxu0
    %v438 = vadd.f32 %v350, %v437
    %v439 = vpop.f32.mrb[0].mxu0
    %440 = vdwg.mxu0
    %v457 = vunpack.c.l.b16 %v326
    %v458 = vunpack.c.l.b16 %v327
    %v459 = vunpack.c.l.b16 %v328
    %v460 = vunpack.c.l.b16 %v329
    %v461 = vunpack.c.l.b16 %v330
    %v462 = vunpack.c.l.b16 %v331
    %v463 = vunpack.c.l.b16 %v332
    %v464 = vunpack.c.l.b16 %v333
    %v465 = vunpack.c.l.b16 %v334
    %v466 = vunpack.c.l.b16 %v335
    %v467 = vunpack.c.l.b16 %v336
    %v468 = vunpack.c.l.b16 %v337
    %v469 = vunpack.c.l.b16 %v338
    %v470 = vunpack.c.l.b16 %v339
    %v471 = vunpack.c.l.b16 %v340
    %v472 = vunpack.c.l.b16 %v341
    %v473 = vpack.c.b16 %v458, %v457
    %v474 = vpack.c.b16 %v460, %v459
    %v475 = vpack.c.b16 %v462, %v461
    %v476 = vpack.c.b16 %v464, %v463
    %v477 = vpack.c.b16 %v466, %v465
    %v478 = vpack.c.b16 %v468, %v467
    %v479 = vpack.c.b16 %v470, %v469
    %v480 = vpack.c.b16 %v472, %v471
    %489 = vmatprep.subr.bf16.mxu0 0
    %490 = vmatpush1.bf16.msra.mxu0 %v473
    %491 = vmatprep.subr.bf16.mxu0 0
    %492 = vmatpush1.bf16.msra.mxu0 %v474
    %493 = vmatprep.subr.bf16.mxu0 0
    %494 = vmatpush1.bf16.msra.mxu0 %v475
    %495 = vmatprep.subr.bf16.mxu0 0
    %496 = vmatpush1.bf16.msra.mxu0 %v476
    %497 = vmatprep.subr.bf16.mxu0 0
    %498 = vmatpush1.bf16.msra.mxu0 %v477
    %499 = vmatprep.subr.bf16.mxu0 0
    %500 = vmatpush1.bf16.msra.mxu0 %v478
    %501 = vmatprep.subr.bf16.mxu0 0
    %502 = vmatpush1.bf16.msra.mxu0 %v479
    %503 = vmatprep.subr.bf16.mxu0 0
    %504 = vmatpush1.bf16.msra.mxu0 %v480
    %505 = vmatprep.subr.bf16.mxu0 0
    %506 = vmatpush1.bf16.msra.mxu0 0
    %507 = vmatprep.subr.bf16.mxu0 0
    %508 = vmatpush1.bf16.msra.mxu0 0
    %509 = vmatprep.subr.bf16.mxu0 0
    %510 = vmatpush1.bf16.msra.mxu0 0
    %511 = vmatprep.subr.bf16.mxu0 0
    %512 = vmatpush1.bf16.msra.mxu0 0
    %513 = vmatprep.subr.bf16.mxu0 0
    %514 = vmatpush1.bf16.msra.mxu0 0
    %515 = vmatprep.subr.bf16.mxu0 0
    %516 = vmatpush1.bf16.msra.mxu0 0
    %517 = vmatprep.subr.bf16.mxu0 0
    %518 = vmatpush1.bf16.msra.mxu0 0
    %519 = vmatprep.subr.bf16.mxu0 0
    %520 = vmatpush1.bf16.msra.mxu0 0
    %521 = vmatprep.mubr.bf16.mxu0 0
    %522 = vmatmul.mubr.bf16.gmra.mrb[0].mxu0 0
    %v523 = vpop.f32.mrb[0].mxu0
    %v524 = vadd.f32 0.0, %v523
    %v525 = vpop.f32.mrb[0].mxu0
    %v526 = vpop.f32.mrb[0].mxu0
    %v527 = vpop.f32.mrb[0].mxu0
    %528 = vdwg.mxu0
    %v529 = vadd.f32 %v435, %v524
    %v530 = vtanh.pop %v529
    %v531 = vxor.u32 %v529, 2147483648
    %v532 = vmul.f32 %v531, 1.442695
    %v533 = vpow.pop %v532
    %v534 = vadd.f32 %v533, 1.0
    %v535 = vrcp.pop %v534
    %v536 = vmul.f32 1.0, %v535
    %v537 = vsel %vm309, %v530, %v536
    %538 = vrot.lane.b32.xlu0 %v537, 96
    %v539 = vpop.permute.xlu0 %538
    %540 = vrot.lane.b32.xlu0 %v537, 64
    %v541 = vpop.permute.xlu0 %540
    %542 = vrot.lane.b32.xlu0 %v537, 32
    %v543 = vpop.permute.xlu0 %542
    %v544 = vmul.f32 %v539, 0.0
    %v545 = vmul.f32 %v537, %v541
    %v546 = vadd.f32 %v544, %v545
    %v547 = vtanh.pop %v546
    %v548 = vmul.f32 %v543, %v547
    %549 = vst [vmem:[#allocation2] sm:$0x3] %v548
    %v550 = vpack.c.bf16 %v548, %v548
    %551 = vmatprep.subr.bf16.mxu0 0
    %552 = vmatpush1.bf16.msra.mxu0 %v473
    %553 = vmatprep.subr.bf16.mxu0 0
    %554 = vmatpush1.bf16.msra.mxu0 %v474
    %555 = vmatprep.subr.bf16.mxu0 0
    %556 = vmatpush1.bf16.msra.mxu0 %v475
    %557 = vmatprep.subr.bf16.mxu0 0
    %558 = vmatpush1.bf16.msra.mxu0 %v476
    %559 = vmatprep.subr.bf16.mxu0 0
    %560 = vmatpush1.bf16.msra.mxu0 %v477
    %561 = vmatprep.subr.bf16.mxu0 0
    %562 = vmatpush1.bf16.msra.mxu0 %v478
    %563 = vmatprep.subr.bf16.mxu0 0
    %564 = vmatpush1.bf16.msra.mxu0 %v479
    %565 = vmatprep.subr.bf16.mxu0 0
    %566 = vmatpush1.bf16.msra.mxu0 %v480
    %567 = vmatprep.subr.bf16.mxu0 0
    %568 = vmatpush1.bf16.msra.mxu0 0
    %569 = vmatprep.subr.bf16.mxu0 0
    %570 = vmatpush1.bf16.msra.mxu0 0
    %571 = vmatprep.subr.bf16.mxu0 0
    %572 = vmatpush1.bf16.msra.mxu0 0
    %573 = vmatprep.subr.bf16.mxu0 0
    %574 = vmatpush1.bf16.msra.mxu0 0
    %575 = vmatprep.subr.bf16.mxu0 0
    %576 = vmatpush1.bf16.msra.mxu0 0
    %577 = vmatprep.subr.bf16.mxu0 0
    %578 = vmatpush1.bf16.msra.mxu0 0
    %579 = vmatprep.subr.bf16.mxu0 0
    %580 = vmatpush1.bf16.msra.mxu0 0
    %581 = vmatprep.subr.bf16.mxu0 0
    %582 = vmatpush1.bf16.msra.mxu0 0
    %583 = vmatprep.mubr.bf16.mxu0 0
    %584 = vmatmul.mubr.bf16.gmra.mrb[0].mxu0 %v550
    %v585 = vpop.f32.mrb[0].mxu0
    %v586 = vadd.f32 0.0, %v585
    %v587 = vpop.f32.mrb[0].mxu0
    %v588 = vpop.f32.mrb[0].mxu0
    %v589 = vpop.f32.mrb[0].mxu0
    %590 = vdwg.mxu0
    %v592 = vrot.slane %v586, 6
    %v594 = vadd.f32 %v435, %v592
    %v595 = vtanh.pop %v594
    %v596 = vxor.u32 %v594, 2147483648
    %v597 = vmul.f32 %v596, 1.442695
    %v598 = vpow.pop %v597
    %v599 = vadd.f32 %v598, 1.0
    %v600 = vrcp.pop %v599
    %v601 = vmul.f32 1.0, %v600
    %v602 = vsel %vm309, %v595, %v601
    %v604 = vrot.slane %v602, 2
    %606 = vrot.lane.b32.xlu0 %v604, 96
    %v607 = vpop.permute.xlu0 %606
    %608 = vrot.lane.b32.xlu0 %v604, 64
    %v609 = vpop.permute.xlu0 %608
    %610 = vrot.lane.b32.xlu0 %v604, 32
    %v611 = vpop.permute.xlu0 %610
    %v612 = vmul.f32 %v607, %v546
    %v614 = vrot.slane %v609, 6
    %v616 = vmul.f32 %v602, %v614
    %v618 = vrot.slane %v616, 2
    %v620 = vadd.f32 %v612, %v618
    %v621 = vtanh.pop %v620
    %v622 = vmul.f32 %v611, %v621
    %623 = vst [vmem:[#allocation2 + $0x2] sm:$0x3] %v622
    %v624 = vpack.c.bf16 %v622, %v622
    %625 = vmatprep.subr.bf16.mxu0 0
    %626 = vmatpush1.bf16.msra.mxu0 %v473
    %627 = vmatprep.subr.bf16.mxu0 0
    %628 = vmatpush1.bf16.msra.mxu0 %v474
    %629 = vmatprep.subr.bf16.mxu0 0
    %630 = vmatpush1.bf16.msra.mxu0 %v475
    %631 = vmatprep.subr.bf16.mxu0 0
    %632 = vmatpush1.bf16.msra.mxu0 %v476
    %633 = vmatprep.subr.bf16.mxu0 0
    %634 = vmatpush1.bf16.msra.mxu0 %v477
    %635 = vmatprep.subr.bf16.mxu0 0
    %636 = vmatpush1.bf16.msra.mxu0 %v478
    %637 = vmatprep.subr.bf16.mxu0 0
    %638 = vmatpush1.bf16.msra.mxu0 %v479
    %639 = vmatprep.subr.bf16.mxu0 0
    %640 = vmatpush1.bf16.msra.mxu0 %v480
    %641 = vmatprep.subr.bf16.mxu0 0
    %642 = vmatpush1.bf16.msra.mxu0 0
    %643 = vmatprep.subr.bf16.mxu0 0
    %644 = vmatpush1.bf16.msra.mxu0 0
    %645 = vmatprep.subr.bf16.mxu0 0
    %646 = vmatpush1.bf16.msra.mxu0 0
    %647 = vmatprep.subr.bf16.mxu0 0
    %648 = vmatpush1.bf16.msra.mxu0 0
    %649 = vmatprep.subr.bf16.mxu0 0
    %650 = vmatpush1.bf16.msra.mxu0 0
    %651 = vmatprep.subr.bf16.mxu0 0
    %652 = vmatpush1.bf16.msra.mxu0 0
    %653 = vmatprep.subr.bf16.mxu0 0
    %654 = vmatpush1.bf16.msra.mxu0 0
    %655 = vmatprep.subr.bf16.mxu0 0
    %656 = vmatpush1.bf16.msra.mxu0 0
    %657 = vmatprep.mubr.bf16.mxu0 0
    %658 = vmatmul.mubr.bf16.gmra.mrb[0].mxu0 %v624
    %v659 = vpop.f32.mrb[0].mxu0
    %v660 = vadd.f32 0.0, %v659
    %v661 = vpop.f32.mrb[0].mxu0
    %v662 = vpop.f32.mrb[0].mxu0
    %v663 = vpop.f32.mrb[0].mxu0
    %664 = vdwg.mxu0
    %v666 = vrot.slane %v660, 4
    %v668 = vadd.f32 %v435, %v666
    %v669 = vtanh.pop %v668
    %v670 = vxor.u32 %v668, 2147483648
    %v671 = vmul.f32 %v670, 1.442695
    %v672 = vpow.pop %v671
    %v673 = vadd.f32 %v672, 1.0
    %v674 = vrcp.pop %v673
    %v675 = vmul.f32 1.0, %v674
    %v676 = vsel %vm309, %v669, %v675
    %v678 = vrot.slane %v676, 4
    %680 = vrot.lane.b32.xlu0 %v678, 96
    %v681 = vpop.permute.xlu0 %680
    %682 = vrot.lane.b32.xlu0 %v678, 64
    %v683 = vpop.permute.xlu0 %682
    %684 = vrot.lane.b32.xlu0 %v678, 32
    %v685 = vpop.permute.xlu0 %684
    %v686 = vmul.f32 %v681, %v620
    %v688 = vrot.slane %v683, 4
    %v690 = vmul.f32 %v676, %v688
    %v692 = vrot.slane %v690, 4
    %v694 = vadd.f32 %v686, %v692
    %v695 = vtanh.pop %v694
    %v696 = vmul.f32 %v685, %v695
    %697 = vst [vmem:[#allocation2 + $0x4] sm:$0x3] %v696
    %v698 = vpack.c.bf16 %v696, %v696
    %699 = vmatprep.subr.bf16.mxu0 0
    %700 = vmatpush1.bf16.msra.mxu0 %v473
    %701 = vmatprep.subr.bf16.mxu0 0
    %702 = vmatpush1.bf16.msra.mxu0 %v474
    %703 = vmatprep.subr.bf16.mxu0 0
    %704 = vmatpush1.bf16.msra.mxu0 %v475
    %705 = vmatprep.subr.bf16.mxu0 0
    %706 = vmatpush1.bf16.msra.mxu0 %v476
    %707 = vmatprep.subr.bf16.mxu0 0
    %708 = vmatpush1.bf16.msra.mxu0 %v477
    %709 = vmatprep.subr.bf16.mxu0 0
    %710 = vmatpush1.bf16.msra.mxu0 %v478
    %711 = vmatprep.subr.bf16.mxu0 0
    %712 = vmatpush1.bf16.msra.mxu0 %v479
    %713 = vmatprep.subr.bf16.mxu0 0
    %714 = vmatpush1.bf16.msra.mxu0 %v480
    %715 = vmatprep.subr.bf16.mxu0 0
    %716 = vmatpush1.bf16.msra.mxu0 0
    %717 = vmatprep.subr.bf16.mxu0 0
    %718 = vmatpush1.bf16.msra.mxu0 0
    %719 = vmatprep.subr.bf16.mxu0 0
    %720 = vmatpush1.bf16.msra.mxu0 0
    %721 = vmatprep.subr.bf16.mxu0 0
    %722 = vmatpush1.bf16.msra.mxu0 0
    %723 = vmatprep.subr.bf16.mxu0 0
    %724 = vmatpush1.bf16.msra.mxu0 0
    %725 = vmatprep.subr.bf16.mxu0 0
    %726 = vmatpush1.bf16.msra.mxu0 0
    %727 = vmatprep.subr.bf16.mxu0 0
    %728 = vmatpush1.bf16.msra.mxu0 0
    %729 = vmatprep.subr.bf16.mxu0 0
    %730 = vmatpush1.bf16.msra.mxu0 0
    %731 = vmatprep.mubr.bf16.mxu0 0
    %732 = vmatmul.mubr.bf16.gmra.mrb[0].mxu0 %v698
    %v733 = vpop.f32.mrb[0].mxu0
    %v734 = vadd.f32 0.0, %v733
    %v735 = vpop.f32.mrb[0].mxu0
    %v736 = vpop.f32.mrb[0].mxu0
    %v737 = vpop.f32.mrb[0].mxu0
    %738 = vdwg.mxu0
    %v740 = vrot.slane %v734, 2
    %v742 = vadd.f32 %v435, %v740
    %v743 = vtanh.pop %v742
    %v744 = vxor.u32 %v742, 2147483648
    %v745 = vmul.f32 %v744, 1.442695
    %v746 = vpow.pop %v745
    %v747 = vadd.f32 %v746, 1.0
    %v748 = vrcp.pop %v747
    %v749 = vmul.f32 1.0, %v748
    %v750 = vsel %vm309, %v743, %v749
    %v752 = vrot.slane %v750, 6
    %754 = vrot.lane.b32.xlu0 %v752, 96
    %v755 = vpop.permute.xlu0 %754
    %756 = vrot.lane.b32.xlu0 %v752, 64
    %v757 = vpop.permute.xlu0 %756
    %758 = vrot.lane.b32.xlu0 %v752, 32
    %v759 = vpop.permute.xlu0 %758
    %v760 = vmul.f32 %v755, %v694
    %v762 = vrot.slane %v757, 2
    %v764 = vmul.f32 %v750, %v762
    %v766 = vrot.slane %v764, 6
    %v768 = vadd.f32 %v760, %v766
    %v769 = vtanh.pop %v768
    %v770 = vmul.f32 %v759, %v769
    %771 = vst [vmem:[#allocation2 + $0x6] sm:$0x3] %v770
    %v772 = vpack.c.bf16 %v770, %v770
    %773 = vmatprep.subr.bf16.mxu0 0
    %774 = vmatpush1.bf16.msra.mxu0 %v473
    %775 = vmatprep.subr.bf16.mxu0 0
    %776 = vmatpush1.bf16.msra.mxu0 %v474
    %777 = vmatprep.subr.bf16.mxu0 0
    %778 = vmatpush1.bf16.msra.mxu0 %v475
    %779 = vmatprep.subr.bf16.mxu0 0
    %780 = vmatpush1.bf16.msra.mxu0 %v476
    %781 = vmatprep.subr.bf16.mxu0 0
    %782 = vmatpush1.bf16.msra.mxu0 %v477
    %783 = vmatprep.subr.bf16.mxu0 0
    %784 = vmatpush1.bf16.msra.mxu0 %v478
    %785 = vmatprep.subr.bf16.mxu0 0
    %786 = vmatpush1.bf16.msra.mxu0 %v479
    %787 = vmatprep.subr.bf16.mxu0 0
    %788 = vmatpush1.bf16.msra.mxu0 %v480
    %789 = vmatprep.subr.bf16.mxu0 0
    %790 = vmatpush1.bf16.msra.mxu0 0
    %791 = vmatprep.subr.bf16.mxu0 0
    %792 = vmatpush1.bf16.msra.mxu0 0
    %793 = vmatprep.subr.bf16.mxu0 0
    %794 = vmatpush1.bf16.msra.mxu0 0
    %795 = vmatprep.subr.bf16.mxu0 0
    %796 = vmatpush1.bf16.msra.mxu0 0
    %797 = vmatprep.subr.bf16.mxu0 0
    %798 = vmatpush1.bf16.msra.mxu0 0
    %799 = vmatprep.subr.bf16.mxu0 0
    %800 = vmatpush1.bf16.msra.mxu0 0
    %801 = vmatprep.subr.bf16.mxu0 0
    %802 = vmatpush1.bf16.msra.mxu0 0
    %803 = vmatprep.subr.bf16.mxu0 0
    %804 = vmatpush1.bf16.msra.mxu0 0
    %805 = vmatprep.mubr.bf16.mxu0 0
    %806 = vmatmul.mubr.bf16.gmra.mrb[0].mxu0 %v772
    %v807 = vpop.f32.mrb[0].mxu0
    %v808 = vadd.f32 0.0, %v807
    %v809 = vpop.f32.mrb[0].mxu0
    %v810 = vpop.f32.mrb[0].mxu0
    %v811 = vpop.f32.mrb[0].mxu0
    %812 = vdwg.mxu0
    %v813 = vadd.f32 %v438, %v808
    %v814 = vtanh.pop %v813
    %v815 = vxor.u32 %v813, 2147483648
    %v816 = vmul.f32 %v815, 1.442695
    %v817 = vpow.pop %v816
    %v818 = vadd.f32 %v817, 1.0
    %v819 = vrcp.pop %v818
    %v820 = vmul.f32 1.0, %v819
    %v821 = vsel %vm309, %v814, %v820
    %822 = vrot.lane.b32.xlu0 %v821, 96
    %v823 = vpop.permute.xlu0 %822
    %824 = vrot.lane.b32.xlu0 %v821, 64
    %v825 = vpop.permute.xlu0 %824
    %826 = vrot.lane.b32.xlu0 %v821, 32
    %v827 = vpop.permute.xlu0 %826
    %v828 = vmul.f32 %v823, %v768
    %v829 = vmul.f32 %v821, %v825
    %v830 = vadd.f32 %v828, %v829
    %v831 = vtanh.pop %v830
    %v832 = vmul.f32 %v827, %v831
    %833 = vst [vmem:[#allocation2 + $0x8] sm:$0x3] %v832
    %v834 = vpack.c.bf16 %v832, %v832
    %835 = vmatprep.subr.bf16.mxu0 0
    %836 = vmatpush1.bf16.msra.mxu0 %v473
    %837 = vmatprep.subr.bf16.mxu0 0
    %838 = vmatpush1.bf16.msra.mxu0 %v474
    %839 = vmatprep.subr.bf16.mxu0 0
    %840 = vmatpush1.bf16.msra.mxu0 %v475
    %841 = vmatprep.subr.bf16.mxu0 0
    %842 = vmatpush1.bf16.msra.mxu0 %v476
    %843 = vmatprep.subr.bf16.mxu0 0
    %844 = vmatpush1.bf16.msra.mxu0 %v477
    %845 = vmatprep.subr.bf16.mxu0 0
    %846 = vmatpush1.bf16.msra.mxu0 %v478
    %847 = vmatprep.subr.bf16.mxu0 0
    %848 = vmatpush1.bf16.msra.mxu0 %v479
    %849 = vmatprep.subr.bf16.mxu0 0
    %850 = vmatpush1.bf16.msra.mxu0 %v480
    %851 = vmatprep.subr.bf16.mxu0 0
    %852 = vmatpush1.bf16.msra.mxu0 0
    %853 = vmatprep.subr.bf16.mxu0 0
    %854 = vmatpush1.bf16.msra.mxu0 0
    %855 = vmatprep.subr.bf16.mxu0 0
    %856 = vmatpush1.bf16.msra.mxu0 0
    %857 = vmatprep.subr.bf16.mxu0 0
    %858 = vmatpush1.bf16.msra.mxu0 0
    %859 = vmatprep.subr.bf16.mxu0 0
    %860 = vmatpush1.bf16.msra.mxu0 0
    %861 = vmatprep.subr.bf16.mxu0 0
    %862 = vmatpush1.bf16.msra.mxu0 0
    %863 = vmatprep.subr.bf16.mxu0 0
    %864 = vmatpush1.bf16.msra.mxu0 0
    %865 = vmatprep.subr.bf16.mxu0 0
    %866 = vmatpush1.bf16.msra.mxu0 0
    %867 = vmatprep.mubr.bf16.mxu0 0
    %868 = vmatmul.mubr.bf16.gmra.mrb[0].mxu0 %v834
    %v869 = vpop.f32.mrb[0].mxu0
    %v870 = vadd.f32 0.0, %v869
    %v871 = vpop.f32.mrb[0].mxu0
    %v872 = vpop.f32.mrb[0].mxu0
    %v873 = vpop.f32.mrb[0].mxu0
    %874 = vdwg.mxu0
    %v876 = vrot.slane %v870, 6
    %v878 = vadd.f32 %v438, %v876
    %v879 = vtanh.pop %v878
    %v880 = vxor.u32 %v878, 2147483648
    %v881 = vmul.f32 %v880, 1.442695
    %v882 = vpow.pop %v881
    %v883 = vadd.f32 %v882, 1.0
    %v884 = vrcp.pop %v883
    %v885 = vmul.f32 1.0, %v884
    %v886 = vsel %vm309, %v879, %v885
    %v888 = vrot.slane %v886, 2
    %890 = vrot.lane.b32.xlu0 %v888, 96
    %v891 = vpop.permute.xlu0 %890
    %892 = vrot.lane.b32.xlu0 %v888, 64
    %v893 = vpop.permute.xlu0 %892
    %894 = vrot.lane.b32.xlu0 %v888, 32
    %v895 = vpop.permute.xlu0 %894
    %v896 = vmul.f32 %v891, %v830
    %v898 = vrot.slane %v893, 6
    %v900 = vmul.f32 %v886, %v898
    %v902 = vrot.slane %v900, 2
    %v904 = vadd.f32 %v896, %v902
    %v905 = vtanh.pop %v904
    %v906 = vmul.f32 %v895, %v905
    %907 = vst [vmem:[#allocation2 + $0xa] sm:$0x3] %v906
    %v908 = vpack.c.bf16 %v906, %v906
    %909 = vmatprep.subr.bf16.mxu0 0
    %910 = vmatpush1.bf16.msra.mxu0 %v473
    %911 = vmatprep.subr.bf16.mxu0 0
    %912 = vmatpush1.bf16.msra.mxu0 %v474
    %913 = vmatprep.subr.bf16.mxu0 0
    %914 = vmatpush1.bf16.msra.mxu0 %v475
    %915 = vmatprep.subr.bf16.mxu0 0
    %916 = vmatpush1.bf16.msra.mxu0 %v476
    %917 = vmatprep.subr.bf16.mxu0 0
    %918 = vmatpush1.bf16.msra.mxu0 %v477
    %919 = vmatprep.subr.bf16.mxu0 0
    %920 = vmatpush1.bf16.msra.mxu0 %v478
    %921 = vmatprep.subr.bf16.mxu0 0
    %922 = vmatpush1.bf16.msra.mxu0 %v479
    %923 = vmatprep.subr.bf16.mxu0 0
    %924 = vmatpush1.bf16.msra.mxu0 %v480
    %925 = vmatprep.subr.bf16.mxu0 0
    %926 = vmatpush1.bf16.msra.mxu0 0
    %927 = vmatprep.subr.bf16.mxu0 0
    %928 = vmatpush1.bf16.msra.mxu0 0
    %929 = vmatprep.subr.bf16.mxu0 0
    %930 = vmatpush1.bf16.msra.mxu0 0
    %931 = vmatprep.subr.bf16.mxu0 0
    %932 = vmatpush1.bf16.msra.mxu0 0
    %933 = vmatprep.subr.bf16.mxu0 0
    %934 = vmatpush1.bf16.msra.mxu0 0
    %935 = vmatprep.subr.bf16.mxu0 0
    %936 = vmatpush1.bf16.msra.mxu0 0
    %937 = vmatprep.subr.bf16.mxu0 0
    %938 = vmatpush1.bf16.msra.mxu0 0
    %939 = vmatprep.subr.bf16.mxu0 0
    %940 = vmatpush1.bf16.msra.mxu0 0
    %941 = vmatprep.mubr.bf16.mxu0 0
    %942 = vmatmul.mubr.bf16.gmra.mrb[0].mxu0 %v908
    %v943 = vpop.f32.mrb[0].mxu0
    %v944 = vadd.f32 0.0, %v943
    %v945 = vpop.f32.mrb[0].mxu0
    %v946 = vpop.f32.mrb[0].mxu0
    %v947 = vpop.f32.mrb[0].mxu0
    %948 = vdwg.mxu0
    %v950 = vrot.slane %v944, 4
    %v952 = vadd.f32 %v438, %v950
    %v953 = vtanh.pop %v952
    %v954 = vxor.u32 %v952, 2147483648
    %v955 = vmul.f32 %v954, 1.442695
    %v956 = vpow.pop %v955
    %v957 = vadd.f32 %v956, 1.0
    %v958 = vrcp.pop %v957
    %v959 = vmul.f32 1.0, %v958
    %v960 = vsel %vm309, %v953, %v959
    %v962 = vrot.slane %v960, 4
    %964 = vrot.lane.b32.xlu0 %v962, 96
    %v965 = vpop.permute.xlu0 %964
    %966 = vrot.lane.b32.xlu0 %v962, 64
    %v967 = vpop.permute.xlu0 %966
    %968 = vrot.lane.b32.xlu0 %v962, 32
    %v969 = vpop.permute.xlu0 %968
    %v970 = vmul.f32 %v965, %v904
    %v972 = vrot.slane %v967, 4
    %v974 = vmul.f32 %v960, %v972
    %v976 = vrot.slane %v974, 4
    %v978 = vadd.f32 %v970, %v976
    %v979 = vtanh.pop %v978
    %v980 = vmul.f32 %v969, %v979
    %981 = vst [vmem:[#allocation2 + $0xc] sm:$0x3] %v980
    %v982 = vpack.c.bf16 %v980, %v980
    %983 = vmatprep.subr.bf16.mxu0 0
    %984 = vmatpush1.bf16.msra.mxu0 %v473
    %985 = vmatprep.subr.bf16.mxu0 0
    %986 = vmatpush1.bf16.msra.mxu0 %v474
    %987 = vmatprep.subr.bf16.mxu0 0
    %988 = vmatpush1.bf16.msra.mxu0 %v475
    %989 = vmatprep.subr.bf16.mxu0 0
    %990 = vmatpush1.bf16.msra.mxu0 %v476
    %991 = vmatprep.subr.bf16.mxu0 0
    %992 = vmatpush1.bf16.msra.mxu0 %v477
    %993 = vmatprep.subr.bf16.mxu0 0
    %994 = vmatpush1.bf16.msra.mxu0 %v478
    %995 = vmatprep.subr.bf16.mxu0 0
    %996 = vmatpush1.bf16.msra.mxu0 %v479
    %997 = vmatprep.subr.bf16.mxu0 0
    %998 = vmatpush1.bf16.msra.mxu0 %v480
    %999 = vmatprep.subr.bf16.mxu0 0
    %1000 = vmatpush1.bf16.msra.mxu0 0
    %1001 = vmatprep.subr.bf16.mxu0 0
    %1002 = vmatpush1.bf16.msra.mxu0 0
    %1003 = vmatprep.subr.bf16.mxu0 0
    %1004 = vmatpush1.bf16.msra.mxu0 0
    %1005 = vmatprep.subr.bf16.mxu0 0
    %1006 = vmatpush1.bf16.msra.mxu0 0
    %1007 = vmatprep.subr.bf16.mxu0 0
    %1008 = vmatpush1.bf16.msra.mxu0 0
    %1009 = vmatprep.subr.bf16.mxu0 0
    %1010 = vmatpush1.bf16.msra.mxu0 0
    %1011 = vmatprep.subr.bf16.mxu0 0
    %1012 = vmatpush1.bf16.msra.mxu0 0
    %1013 = vmatprep.subr.bf16.mxu0 0
    %1014 = vmatpush1.bf16.msra.mxu0 0
    %1015 = vmatprep.mubr.bf16.mxu0 0
    %1016 = vmatmul.mubr.bf16.gmra.mrb[0].mxu0 %v982
    %v1017 = vpop.f32.mrb[0].mxu0
    %v1018 = vadd.f32 0.0, %v1017
    %v1019 = vpop.f32.mrb[0].mxu0
    %v1020 = vpop.f32.mrb[0].mxu0
    %v1021 = vpop.f32.mrb[0].mxu0
    %1022 = vdwg.mxu0
    %v1024 = vrot.slane %v1018, 2
    %v1026 = vadd.f32 %v438, %v1024
    %v1027 = vtanh.pop %v1026
    %v1028 = vxor.u32 %v1026, 2147483648
    %v1029 = vmul.f32 %v1028, 1.442695
    %v1030 = vpow.pop %v1029
    %v1031 = vadd.f32 %v1030, 1.0
    %v1032 = vrcp.pop %v1031
    %v1033 = vmul.f32 1.0, %v1032
    %v1034 = vsel %vm309, %v1027, %v1033
    %v1036 = vrot.slane %v1034, 6
    %1038 = vrot.lane.b32.xlu0 %v1036, 96
    %v1039 = vpop.permute.xlu0 %1038
    %1040 = vrot.lane.b32.xlu0 %v1036, 64
    %v1041 = vpop.permute.xlu0 %1040
    %1042 = vrot.lane.b32.xlu0 %v1036, 32
    %v1043 = vpop.permute.xlu0 %1042
    %v1044 = vmul.f32 %v1039, %v978
    %v1046 = vrot.slane %v1041, 2
    %v1048 = vmul.f32 %v1034, %v1046
    %v1050 = vrot.slane %v1048, 6
    %v1052 = vadd.f32 %v1044, %v1050
    %v1053 = vtanh.pop %v1052
    %v1054 = vmul.f32 %v1043, %v1053
    %1055 = vst [vmem:[#allocation2 + $0xe] sm:$0x3] %v1054
    %s1056 = scalar_lea.vmem [#allocation7], 64
    %v1057 = vld [vmem:[%s1056] sm:$0xf]
    %v1058 = vld [vmem:[%s1056 + $0x4] sm:$0xf]
    %v1059 = vld [vmem:[%s1056 + $0x8] sm:$0xf]
    %v1060 = vld [vmem:[%s1056 + $0xc] sm:$0xf]
    %v1061 = vld [vmem:[%s1056 + $0x10] sm:$0xf]
    %v1062 = vld [vmem:[%s1056 + $0x14] sm:$0xf]
    %v1063 = vld [vmem:[%s1056 + $0x18] sm:$0xf]
    %v1064 = vld [vmem:[%s1056 + $0x1c] sm:$0xf]
    %v1065 = vld [vmem:[%s1056 + $0x20] sm:$0xf]
    %v1066 = vld [vmem:[%s1056 + $0x24] sm:$0xf]
    %v1067 = vld [vmem:[%s1056 + $0x28] sm:$0xf]
    %v1068 = vld [vmem:[%s1056 + $0x2c] sm:$0xf]
    %v1069 = vld [vmem:[%s1056 + $0x30] sm:$0xf]
    %v1070 = vld [vmem:[%s1056 + $0x34] sm:$0xf]
    %v1071 = vld [vmem:[%s1056 + $0x38] sm:$0xf]
    %v1072 = vld [vmem:[%s1056 + $0x3c] sm:$0xf]
    %s1073 = scalar_lea.vmem [#allocation8], 64
    %v1074 = vld [vmem:[%s1073] sm:$0xf]
    %v1075 = vld [vmem:[%s1073 + $0x4] sm:$0xf]
    %v1076 = vld [vmem:[%s1073 + $0x8] sm:$0xf]
    %v1077 = vld [vmem:[%s1073 + $0xc] sm:$0xf]
    %v1078 = vld [vmem:[%s1073 + $0x10] sm:$0xf]
    %v1079 = vld [vmem:[%s1073 + $0x14] sm:$0xf]
    %v1080 = vld [vmem:[%s1073 + $0x18] sm:$0xf]
    %v1081 = vld [vmem:[%s1073 + $0x1c] sm:$0xf]
    %v1082 = vld [vmem:[%s1073 + $0x20] sm:$0xf]
    %v1083 = vld [vmem:[%s1073 + $0x24] sm:$0xf]
    %v1084 = vld [vmem:[%s1073 + $0x28] sm:$0xf]
    %v1085 = vld [vmem:[%s1073 + $0x2c] sm:$0xf]
    %v1086 = vld [vmem:[%s1073 + $0x30] sm:$0xf]
    %v1087 = vld [vmem:[%s1073 + $0x34] sm:$0xf]
    %v1088 = vld [vmem:[%s1073 + $0x38] sm:$0xf]
    %v1089 = vld [vmem:[%s1073 + $0x3c] sm:$0xf]
    %s1090 = scalar_lea.vmem %s4, 1
    %v1091 = vld [vmem:[%s1090] sm:$0x1]
    %v1092 = vld [vmem:[#allocation2] sm:$0xff]
    %v1093 = vld [vmem:[#allocation2 + $0x8] sm:$0xff]
    %v1094 = vpack.c.bf16 %v1093, %v1092
    %v1096 = vlaneseq
    %v1097 = vshrl.u32 %v1096, 7
    %v1098 = vsub.s32 0, %v1097
    %v1099 = vrot.slane %v1091, %v1098
    %v1117 = vunpack.c.l.b16 %v1057
    %v1118 = vunpack.c.l.b16 %v1058
    %v1119 = vunpack.c.l.b16 %v1059
    %v1120 = vunpack.c.l.b16 %v1060
    %v1121 = vunpack.c.l.b16 %v1061
    %v1122 = vunpack.c.l.b16 %v1062
    %v1123 = vunpack.c.l.b16 %v1063
    %v1124 = vunpack.c.l.b16 %v1064
    %v1125 = vunpack.c.l.b16 %v1065
    %v1126 = vunpack.c.l.b16 %v1066
    %v1127 = vunpack.c.l.b16 %v1067
    %v1128 = vunpack.c.l.b16 %v1068
    %v1129 = vunpack.c.l.b16 %v1069
    %v1130 = vunpack.c.l.b16 %v1070
    %v1131 = vunpack.c.l.b16 %v1071
    %v1132 = vunpack.c.l.b16 %v1072
    %v1133 = vpack.c.b16 %v1118, %v1117
    %v1134 = vpack.c.b16 %v1120, %v1119
    %v1135 = vpack.c.b16 %v1122, %v1121
    %v1136 = vpack.c.b16 %v1124, %v1123
    %v1137 = vpack.c.b16 %v1126, %v1125
    %v1138 = vpack.c.b16 %v1128, %v1127
    %v1139 = vpack.c.b16 %v1130, %v1129
    %v1140 = vpack.c.b16 %v1132, %v1131
    %1149 = vmatprep.subr.bf16.mxu0 0
    %1150 = vmatpush1.bf16.msra.mxu0 %v1133
    %1151 = vmatprep.subr.bf16.mxu0 0
    %1152 = vmatpush1.bf16.msra.mxu0 %v1134
    %1153 = vmatprep.subr.bf16.mxu0 0
    %1154 = vmatpush1.bf16.msra.mxu0 %v1135
    %1155 = vmatprep.subr.bf16.mxu0 0
    %1156 = vmatpush1.bf16.msra.mxu0 %v1136
    %1157 = vmatprep.subr.bf16.mxu0 0
    %1158 = vmatpush1.bf16.msra.mxu0 %v1137
    %1159 = vmatprep.subr.bf16.mxu0 0
    %1160 = vmatpush1.bf16.msra.mxu0 %v1138
    %1161 = vmatprep.subr.bf16.mxu0 0
    %1162 = vmatpush1.bf16.msra.mxu0 %v1139
    %1163 = vmatprep.subr.bf16.mxu0 0
    %1164 = vmatpush1.bf16.msra.mxu0 %v1140
    %1165 = vmatprep.subr.bf16.mxu0 0
    %1166 = vmatpush1.bf16.msra.mxu0 0
    %1167 = vmatprep.subr.bf16.mxu0 0
    %1168 = vmatpush1.bf16.msra.mxu0 0
    %1169 = vmatprep.subr.bf16.mxu0 0
    %1170 = vmatpush1.bf16.msra.mxu0 0
    %1171 = vmatprep.subr.bf16.mxu0 0
    %1172 = vmatpush1.bf16.msra.mxu0 0
    %1173 = vmatprep.subr.bf16.mxu0 0
    %1174 = vmatpush1.bf16.msra.mxu0 0
    %1175 = vmatprep.subr.bf16.mxu0 0
    %1176 = vmatpush1.bf16.msra.mxu0 0
    %1177 = vmatprep.subr.bf16.mxu0 0
    %1178 = vmatpush1.bf16.msra.mxu0 0
    %1179 = vmatprep.subr.bf16.mxu0 0
    %1180 = vmatpush1.bf16.msra.mxu0 0
    %1181 = vmatprep.mubr.bf16.mxu0 0
    %1182 = vmatmul.mubr.bf16.gmra.mrb[0].mxu0 %v1094
    %v1183 = vpop.f32.mrb[0].mxu0
    %v1184 = vadd.f32 %v1099, %v1183
    %v1185 = vpop.f32.mrb[0].mxu0
    %v1186 = vpop.f32.mrb[0].mxu0
    %v1187 = vadd.f32 %v1099, %v1186
    %v1188 = vpop.f32.mrb[0].mxu0
    %1189 = vdwg.mxu0
    %v1206 = vunpack.c.l.b16 %v1074
    %v1207 = vunpack.c.l.b16 %v1075
    %v1208 = vunpack.c.l.b16 %v1076
    %v1209 = vunpack.c.l.b16 %v1077
    %v1210 = vunpack.c.l.b16 %v1078
    %v1211 = vunpack.c.l.b16 %v1079
    %v1212 = vunpack.c.l.b16 %v1080
    %v1213 = vunpack.c.l.b16 %v1081
    %v1214 = vunpack.c.l.b16 %v1082
    %v1215 = vunpack.c.l.b16 %v1083
    %v1216 = vunpack.c.l.b16 %v1084
    %v1217 = vunpack.c.l.b16 %v1085
    %v1218 = vunpack.c.l.b16 %v1086
    %v1219 = vunpack.c.l.b16 %v1087
    %v1220 = vunpack.c.l.b16 %v1088
    %v1221 = vunpack.c.l.b16 %v1089
    %v1222 = vpack.c.b16 %v1207, %v1206
    %v1223 = vpack.c.b16 %v1209, %v1208
    %v1224 = vpack.c.b16 %v1211, %v1210
    %v1225 = vpack.c.b16 %v1213, %v1212
    %v1226 = vpack.c.b16 %v1215, %v1214
    %v1227 = vpack.c.b16 %v1217, %v1216
    %v1228 = vpack.c.b16 %v1219, %v1218
    %v1229 = vpack.c.b16 %v1221, %v1220
    %1238 = vmatprep.subr.bf16.mxu0 0
    %1239 = vmatpush1.bf16.msra.mxu0 %v1222
    %1240 = vmatprep.subr.bf16.mxu0 0
    %1241 = vmatpush1.bf16.msra.mxu0 %v1223
    %1242 = vmatprep.subr.bf16.mxu0 0
    %1243 = vmatpush1.bf16.msra.mxu0 %v1224
    %1244 = vmatprep.subr.bf16.mxu0 0
    %1245 = vmatpush1.bf16.msra.mxu0 %v1225
    %1246 = vmatprep.subr.bf16.mxu0 0
    %1247 = vmatpush1.bf16.msra.mxu0 %v1226
    %1248 = vmatprep.subr.bf16.mxu0 0
    %1249 = vmatpush1.bf16.msra.mxu0 %v1227
    %1250 = vmatprep.subr.bf16.mxu0 0
    %1251 = vmatpush1.bf16.msra.mxu0 %v1228
    %1252 = vmatprep.subr.bf16.mxu0 0
    %1253 = vmatpush1.bf16.msra.mxu0 %v1229
    %1254 = vmatprep.subr.bf16.mxu0 0
    %1255 = vmatpush1.bf16.msra.mxu0 0
    %1256 = vmatprep.subr.bf16.mxu0 0
    %1257 = vmatpush1.bf16.msra.mxu0 0
    %1258 = vmatprep.subr.bf16.mxu0 0
    %1259 = vmatpush1.bf16.msra.mxu0 0
    %1260 = vmatprep.subr.bf16.mxu0 0
    %1261 = vmatpush1.bf16.msra.mxu0 0
    %1262 = vmatprep.subr.bf16.mxu0 0
    %1263 = vmatpush1.bf16.msra.mxu0 0
    %1264 = vmatprep.subr.bf16.mxu0 0
    %1265 = vmatpush1.bf16.msra.mxu0 0
    %1266 = vmatprep.subr.bf16.mxu0 0
    %1267 = vmatpush1.bf16.msra.mxu0 0
    %1268 = vmatprep.subr.bf16.mxu0 0
    %1269 = vmatpush1.bf16.msra.mxu0 0
    %1270 = vmatprep.mubr.bf16.mxu0 0
    %1271 = vmatmul.mubr.bf16.gmra.mrb[0].mxu0 0
    %v1272 = vpop.f32.mrb[0].mxu0
    %v1273 = vadd.f32 0.0, %v1272
    %v1274 = vpop.f32.mrb[0].mxu0
    %v1275 = vpop.f32.mrb[0].mxu0
    %v1276 = vpop.f32.mrb[0].mxu0
    %1277 = vdwg.mxu0
    %v1278 = vadd.f32 %v1184, %v1273
    %v1279 = vtanh.pop %v1278
    %v1280 = vxor.u32 %v1278, 2147483648
    %v1281 = vmul.f32 %v1280, 1.442695
    %v1282 = vpow.pop %v1281
    %v1283 = vadd.f32 %v1282, 1.0
    %v1284 = vrcp.pop %v1283
    %v1285 = vmul.f32 1.0, %v1284
    %v1286 = vsel %vm309, %v1279, %v1285
    %1287 = vrot.lane.b32.xlu0 %v1286, 96
    %v1288 = vpop.permute.xlu0 %1287
    %1289 = vrot.lane.b32.xlu0 %v1286, 64
    %v1290 = vpop.permute.xlu0 %1289
    %1291 = vrot.lane.b32.xlu0 %v1286, 32
    %v1292 = vpop.permute.xlu0 %1291
    %v1293 = vmul.f32 %v1288, 0.0
    %v1294 = vmul.f32 %v1286, %v1290
    %v1295 = vadd.f32 %v1293, %v1294
    %v1296 = vtanh.pop %v1295
    %v1297 = vmul.f32 %v1292, %v1296
    %v1298 = vpack.c.bf16 %v1297, %v1297
    %1299 = vmatprep.subr.bf16.mxu0 0
    %1300 = vmatpush1.bf16.msra.mxu0 %v1222
    %1301 = vmatprep.subr.bf16.mxu0 0
    %1302 = vmatpush1.bf16.msra.mxu0 %v1223
    %1303 = vmatprep.subr.bf16.mxu0 0
    %1304 = vmatpush1.bf16.msra.mxu0 %v1224
    %1305 = vmatprep.subr.bf16.mxu0 0
    %1306 = vmatpush1.bf16.msra.mxu0 %v1225
    %1307 = vmatprep.subr.bf16.mxu0 0
    %1308 = vmatpush1.bf16.msra.mxu0 %v1226
    %1309 = vmatprep.subr.bf16.mxu0 0
    %1310 = vmatpush1.bf16.msra.mxu0 %v1227
    %1311 = vmatprep.subr.bf16.mxu0 0
    %1312 = vmatpush1.bf16.msra.mxu0 %v1228
    %1313 = vmatprep.subr.bf16.mxu0 0
    %1314 = vmatpush1.bf16.msra.mxu0 %v1229
    %1315 = vmatprep.subr.bf16.mxu0 0
    %1316 = vmatpush1.bf16.msra.mxu0 0
    %1317 = vmatprep.subr.bf16.mxu0 0
    %1318 = vmatpush1.bf16.msra.mxu0 0
    %1319 = vmatprep.subr.bf16.mxu0 0
    %1320 = vmatpush1.bf16.msra.mxu0 0
    %1321 = vmatprep.subr.bf16.mxu0 0
    %1322 = vmatpush1.bf16.msra.mxu0 0
    %1323 = vmatprep.subr.bf16.mxu0 0
    %1324 = vmatpush1.bf16.msra.mxu0 0
    %1325 = vmatprep.subr.bf16.mxu0 0
    %1326 = vmatpush1.bf16.msra.mxu0 0
    %1327 = vmatprep.subr.bf16.mxu0 0
    %1328 = vmatpush1.bf16.msra.mxu0 0
    %1329 = vmatprep.subr.bf16.mxu0 0
    %1330 = vmatpush1.bf16.msra.mxu0 0
    %1331 = vmatprep.mubr.bf16.mxu0 0
    %1332 = vmatmul.mubr.bf16.gmra.mrb[0].mxu0 %v1298
    %v1333 = vpop.f32.mrb[0].mxu0
    %v1334 = vadd.f32 0.0, %v1333
    %v1335 = vpop.f32.mrb[0].mxu0
    %v1336 = vpop.f32.mrb[0].mxu0
    %v1337 = vpop.f32.mrb[0].mxu0
    %1338 = vdwg.mxu0
    %v1340 = vrot.slane %v1334, 6
    %v1342 = vadd.f32 %v1184, %v1340
    %v1343 = vtanh.pop %v1342
    %v1344 = vxor.u32 %v1342, 2147483648
    %v1345 = vmul.f32 %v1344, 1.442695
    %v1346 = vpow.pop %v1345
    %v1347 = vadd.f32 %v1346, 1.0
    %v1348 = vrcp.pop %v1347
    %v1349 = vmul.f32 1.0, %v1348
    %v1350 = vsel %vm309, %v1343, %v1349
    %v1352 = vrot.slane %v1350, 2
    %1354 = vrot.lane.b32.xlu0 %v1352, 96
    %v1355 = vpop.permute.xlu0 %1354
    %1356 = vrot.lane.b32.xlu0 %v1352, 64
    %v1357 = vpop.permute.xlu0 %1356
    %1358 = vrot.lane.b32.xlu0 %v1352, 32
    %v1359 = vpop.permute.xlu0 %1358
    %v1360 = vmul.f32 %v1355, %v1295
    %v1362 = vrot.slane %v1357, 6
    %v1364 = vmul.f32 %v1350, %v1362
    %v1366 = vrot.slane %v1364, 2
    %v1368 = vadd.f32 %v1360, %v1366
    %v1369 = vtanh.pop %v1368
    %v1370 = vmul.f32 %v1359, %v1369
    %v1371 = vpack.c.bf16 %v1370, %v1370
    %1372 = vmatprep.subr.bf16.mxu0 0
    %1373 = vmatpush1.bf16.msra.mxu0 %v1222
    %1374 = vmatprep.subr.bf16.mxu0 0
    %1375 = vmatpush1.bf16.msra.mxu0 %v1223
    %1376 = vmatprep.subr.bf16.mxu0 0
    %1377 = vmatpush1.bf16.msra.mxu0 %v1224
    %1378 = vmatprep.subr.bf16.mxu0 0
    %1379 = vmatpush1.bf16.msra.mxu0 %v1225
    %1380 = vmatprep.subr.bf16.mxu0 0
    %1381 = vmatpush1.bf16.msra.mxu0 %v1226
    %1382 = vmatprep.subr.bf16.mxu0 0
    %1383 = vmatpush1.bf16.msra.mxu0 %v1227
    %1384 = vmatprep.subr.bf16.mxu0 0
    %1385 = vmatpush1.bf16.msra.mxu0 %v1228
    %1386 = vmatprep.subr.bf16.mxu0 0
    %1387 = vmatpush1.bf16.msra.mxu0 %v1229
    %1388 = vmatprep.subr.bf16.mxu0 0
    %1389 = vmatpush1.bf16.msra.mxu0 0
    %1390 = vmatprep.subr.bf16.mxu0 0
    %1391 = vmatpush1.bf16.msra.mxu0 0
    %1392 = vmatprep.subr.bf16.mxu0 0
    %1393 = vmatpush1.bf16.msra.mxu0 0
    %1394 = vmatprep.subr.bf16.mxu0 0
    %1395 = vmatpush1.bf16.msra.mxu0 0
    %1396 = vmatprep.subr.bf16.mxu0 0
    %1397 = vmatpush1.bf16.msra.mxu0 0
    %1398 = vmatprep.subr.bf16.mxu0 0
    %1399 = vmatpush1.bf16.msra.mxu0 0
    %1400 = vmatprep.subr.bf16.mxu0 0
    %1401 = vmatpush1.bf16.msra.mxu0 0
    %1402 = vmatprep.subr.bf16.mxu0 0
    %1403 = vmatpush1.bf16.msra.mxu0 0
    %1404 = vmatprep.mubr.bf16.mxu0 0
    %1405 = vmatmul.mubr.bf16.gmra.mrb[0].mxu0 %v1371
    %v1406 = vpop.f32.mrb[0].mxu0
    %v1407 = vadd.f32 0.0, %v1406
    %v1408 = vpop.f32.mrb[0].mxu0
    %v1409 = vpop.f32.mrb[0].mxu0
    %v1410 = vpop.f32.mrb[0].mxu0
    %1411 = vdwg.mxu0
    %v1413 = vrot.slane %v1407, 4
    %v1415 = vadd.f32 %v1184, %v1413
    %v1416 = vtanh.pop %v1415
    %v1417 = vxor.u32 %v1415, 2147483648
    %v1418 = vmul.f32 %v1417, 1.442695
    %v1419 = vpow.pop %v1418
    %v1420 = vadd.f32 %v1419, 1.0
    %v1421 = vrcp.pop %v1420
    %v1422 = vmul.f32 1.0, %v1421
    %v1423 = vsel %vm309, %v1416, %v1422
    %v1425 = vrot.slane %v1423, 4
    %1427 = vrot.lane.b32.xlu0 %v1425, 96
    %v1428 = vpop.permute.xlu0 %1427
    %1429 = vrot.lane.b32.xlu0 %v1425, 64
    %v1430 = vpop.permute.xlu0 %1429
    %1431 = vrot.lane.b32.xlu0 %v1425, 32
    %v1432 = vpop.permute.xlu0 %1431
    %v1433 = vmul.f32 %v1428, %v1368
    %v1435 = vrot.slane %v1430, 4
    %v1437 = vmul.f32 %v1423, %v1435
    %v1439 = vrot.slane %v1437, 4
    %v1441 = vadd.f32 %v1433, %v1439
    %v1442 = vtanh.pop %v1441
    %v1443 = vmul.f32 %v1432, %v1442
    %v1444 = vpack.c.bf16 %v1443, %v1443
    %1445 = vmatprep.subr.bf16.mxu0 0
    %1446 = vmatpush1.bf16.msra.mxu0 %v1222
    %1447 = vmatprep.subr.bf16.mxu0 0
    %1448 = vmatpush1.bf16.msra.mxu0 %v1223
    %1449 = vmatprep.subr.bf16.mxu0 0
    %1450 = vmatpush1.bf16.msra.mxu0 %v1224
    %1451 = vmatprep.subr.bf16.mxu0 0
    %1452 = vmatpush1.bf16.msra.mxu0 %v1225
    %1453 = vmatprep.subr.bf16.mxu0 0
    %1454 = vmatpush1.bf16.msra.mxu0 %v1226
    %1455 = vmatprep.subr.bf16.mxu0 0
    %1456 = vmatpush1.bf16.msra.mxu0 %v1227
    %1457 = vmatprep.subr.bf16.mxu0 0
    %1458 = vmatpush1.bf16.msra.mxu0 %v1228
    %1459 = vmatprep.subr.bf16.mxu0 0
    %1460 = vmatpush1.bf16.msra.mxu0 %v1229
    %1461 = vmatprep.subr.bf16.mxu0 0
    %1462 = vmatpush1.bf16.msra.mxu0 0
    %1463 = vmatprep.subr.bf16.mxu0 0
    %1464 = vmatpush1.bf16.msra.mxu0 0
    %1465 = vmatprep.subr.bf16.mxu0 0
    %1466 = vmatpush1.bf16.msra.mxu0 0
    %1467 = vmatprep.subr.bf16.mxu0 0
    %1468 = vmatpush1.bf16.msra.mxu0 0
    %1469 = vmatprep.subr.bf16.mxu0 0
    %1470 = vmatpush1.bf16.msra.mxu0 0
    %1471 = vmatprep.subr.bf16.mxu0 0
    %1472 = vmatpush1.bf16.msra.mxu0 0
    %1473 = vmatprep.subr.bf16.mxu0 0
    %1474 = vmatpush1.bf16.msra.mxu0 0
    %1475 = vmatprep.subr.bf16.mxu0 0
    %1476 = vmatpush1.bf16.msra.mxu0 0
    %1477 = vmatprep.mubr.bf16.mxu0 0
    %1478 = vmatmul.mubr.bf16.gmra.mrb[0].mxu0 %v1444
    %v1479 = vpop.f32.mrb[0].mxu0
    %v1480 = vadd.f32 0.0, %v1479
    %v1481 = vpop.f32.mrb[0].mxu0
    %v1482 = vpop.f32.mrb[0].mxu0
    %v1483 = vpop.f32.mrb[0].mxu0
    %1484 = vdwg.mxu0
    %v1486 = vrot.slane %v1480, 2
    %v1488 = vadd.f32 %v1184, %v1486
    %v1489 = vtanh.pop %v1488
    %v1490 = vxor.u32 %v1488, 2147483648
    %v1491 = vmul.f32 %v1490, 1.442695
    %v1492 = vpow.pop %v1491
    %v1493 = vadd.f32 %v1492, 1.0
    %v1494 = vrcp.pop %v1493
    %v1495 = vmul.f32 1.0, %v1494
    %v1496 = vsel %vm309, %v1489, %v1495
    %v1498 = vrot.slane %v1496, 6
    %1500 = vrot.lane.b32.xlu0 %v1498, 96
    %v1501 = vpop.permute.xlu0 %1500
    %1502 = vrot.lane.b32.xlu0 %v1498, 64
    %v1503 = vpop.permute.xlu0 %1502
    %1504 = vrot.lane.b32.xlu0 %v1498, 32
    %v1505 = vpop.permute.xlu0 %1504
    %v1506 = vmul.f32 %v1501, %v1441
    %v1508 = vrot.slane %v1503, 2
    %v1510 = vmul.f32 %v1496, %v1508
    %v1512 = vrot.slane %v1510, 6
    %v1514 = vadd.f32 %v1506, %v1512
    %v1515 = vtanh.pop %v1514
    %v1516 = vmul.f32 %v1505, %v1515
    %v1517 = vpack.c.bf16 %v1516, %v1516
    %1518 = vmatprep.subr.bf16.mxu0 0
    %1519 = vmatpush1.bf16.msra.mxu0 %v1222
    %1520 = vmatprep.subr.bf16.mxu0 0
    %1521 = vmatpush1.bf16.msra.mxu0 %v1223
    %1522 = vmatprep.subr.bf16.mxu0 0
    %1523 = vmatpush1.bf16.msra.mxu0 %v1224
    %1524 = vmatprep.subr.bf16.mxu0 0
    %1525 = vmatpush1.bf16.msra.mxu0 %v1225
    %1526 = vmatprep.subr.bf16.mxu0 0
    %1527 = vmatpush1.bf16.msra.mxu0 %v1226
    %1528 = vmatprep.subr.bf16.mxu0 0
    %1529 = vmatpush1.bf16.msra.mxu0 %v1227
    %1530 = vmatprep.subr.bf16.mxu0 0
    %1531 = vmatpush1.bf16.msra.mxu0 %v1228
    %1532 = vmatprep.subr.bf16.mxu0 0
    %1533 = vmatpush1.bf16.msra.mxu0 %v1229
    %1534 = vmatprep.subr.bf16.mxu0 0
    %1535 = vmatpush1.bf16.msra.mxu0 0
    %1536 = vmatprep.subr.bf16.mxu0 0
    %1537 = vmatpush1.bf16.msra.mxu0 0
    %1538 = vmatprep.subr.bf16.mxu0 0
    %1539 = vmatpush1.bf16.msra.mxu0 0
    %1540 = vmatprep.subr.bf16.mxu0 0
    %1541 = vmatpush1.bf16.msra.mxu0 0
    %1542 = vmatprep.subr.bf16.mxu0 0
    %1543 = vmatpush1.bf16.msra.mxu0 0
    %1544 = vmatprep.subr.bf16.mxu0 0
    %1545 = vmatpush1.bf16.msra.mxu0 0
    %1546 = vmatprep.subr.bf16.mxu0 0
    %1547 = vmatpush1.bf16.msra.mxu0 0
    %1548 = vmatprep.subr.bf16.mxu0 0
    %1549 = vmatpush1.bf16.msra.mxu0 0
    %1550 = vmatprep.mubr.bf16.mxu0 0
    %1551 = vmatmul.mubr.bf16.gmra.mrb[0].mxu0 %v1517
    %v1552 = vpop.f32.mrb[0].mxu0
    %v1553 = vadd.f32 0.0, %v1552
    %v1554 = vpop.f32.mrb[0].mxu0
    %v1555 = vpop.f32.mrb[0].mxu0
    %v1556 = vpop.f32.mrb[0].mxu0
    %1557 = vdwg.mxu0
    %v1558 = vadd.f32 %v1187, %v1553
    %v1559 = vtanh.pop %v1558
    %v1560 = vxor.u32 %v1558, 2147483648
    %v1561 = vmul.f32 %v1560, 1.442695
    %v1562 = vpow.pop %v1561
    %v1563 = vadd.f32 %v1562, 1.0
    %v1564 = vrcp.pop %v1563
    %v1565 = vmul.f32 1.0, %v1564
    %v1566 = vsel %vm309, %v1559, %v1565
    %1567 = vrot.lane.b32.xlu0 %v1566, 96
    %v1568 = vpop.permute.xlu0 %1567
    %1569 = vrot.lane.b32.xlu0 %v1566, 64
    %v1570 = vpop.permute.xlu0 %1569
    %1571 = vrot.lane.b32.xlu0 %v1566, 32
    %v1572 = vpop.permute.xlu0 %1571
    %v1573 = vmul.f32 %v1568, %v1514
    %v1574 = vmul.f32 %v1566, %v1570
    %v1575 = vadd.f32 %v1573, %v1574
    %v1576 = vtanh.pop %v1575
    %v1577 = vmul.f32 %v1572, %v1576
    %v1578 = vpack.c.bf16 %v1577, %v1577
    %1579 = vmatprep.subr.bf16.mxu0 0
    %1580 = vmatpush1.bf16.msra.mxu0 %v1222
    %1581 = vmatprep.subr.bf16.mxu0 0
    %1582 = vmatpush1.bf16.msra.mxu0 %v1223
    %1583 = vmatprep.subr.bf16.mxu0 0
    %1584 = vmatpush1.bf16.msra.mxu0 %v1224
    %1585 = vmatprep.subr.bf16.mxu0 0
    %1586 = vmatpush1.bf16.msra.mxu0 %v1225
    %1587 = vmatprep.subr.bf16.mxu0 0
    %1588 = vmatpush1.bf16.msra.mxu0 %v1226
    %1589 = vmatprep.subr.bf16.mxu0 0
    %1590 = vmatpush1.bf16.msra.mxu0 %v1227
    %1591 = vmatprep.subr.bf16.mxu0 0
    %1592 = vmatpush1.bf16.msra.mxu0 %v1228
    %1593 = vmatprep.subr.bf16.mxu0 0
    %1594 = vmatpush1.bf16.msra.mxu0 %v1229
    %1595 = vmatprep.subr.bf16.mxu0 0
    %1596 = vmatpush1.bf16.msra.mxu0 0
    %1597 = vmatprep.subr.bf16.mxu0 0
    %1598 = vmatpush1.bf16.msra.mxu0 0
    %1599 = vmatprep.subr.bf16.mxu0 0
    %1600 = vmatpush1.bf16.msra.mxu0 0
    %1601 = vmatprep.subr.bf16.mxu0 0
    %1602 = vmatpush1.bf16.msra.mxu0 0
    %1603 = vmatprep.subr.bf16.mxu0 0
    %1604 = vmatpush1.bf16.msra.mxu0 0
    %1605 = vmatprep.subr.bf16.mxu0 0
    %1606 = vmatpush1.bf16.msra.mxu0 0
    %1607 = vmatprep.subr.bf16.mxu0 0
    %1608 = vmatpush1.bf16.msra.mxu0 0
    %1609 = vmatprep.subr.bf16.mxu0 0
    %1610 = vmatpush1.bf16.msra.mxu0 0
    %1611 = vmatprep.mubr.bf16.mxu0 0
    %1612 = vmatmul.mubr.bf16.gmra.mrb[0].mxu0 %v1578
    %v1613 = vpop.f32.mrb[0].mxu0
    %v1614 = vadd.f32 0.0, %v1613
    %v1615 = vpop.f32.mrb[0].mxu0
    %v1616 = vpop.f32.mrb[0].mxu0
    %v1617 = vpop.f32.mrb[0].mxu0
    %1618 = vdwg.mxu0
    %v1620 = vrot.slane %v1614, 6
    %v1622 = vadd.f32 %v1187, %v1620
    %v1623 = vtanh.pop %v1622
    %v1624 = vxor.u32 %v1622, 2147483648
    %v1625 = vmul.f32 %v1624, 1.442695
    %v1626 = vpow.pop %v1625
    %v1627 = vadd.f32 %v1626, 1.0
    %v1628 = vrcp.pop %v1627
    %v1629 = vmul.f32 1.0, %v1628
    %v1630 = vsel %vm309, %v1623, %v1629
    %v1632 = vrot.slane %v1630, 2
    %1634 = vrot.lane.b32.xlu0 %v1632, 96
    %v1635 = vpop.permute.xlu0 %1634
    %1636 = vrot.lane.b32.xlu0 %v1632, 64
    %v1637 = vpop.permute.xlu0 %1636
    %1638 = vrot.lane.b32.xlu0 %v1632, 32
    %v1639 = vpop.permute.xlu0 %1638
    %v1640 = vmul.f32 %v1635, %v1575
    %v1642 = vrot.slane %v1637, 6
    %v1644 = vmul.f32 %v1630, %v1642
    %v1646 = vrot.slane %v1644, 2
    %v1648 = vadd.f32 %v1640, %v1646
    %v1649 = vtanh.pop %v1648
    %v1650 = vmul.f32 %v1639, %v1649
    %v1651 = vpack.c.bf16 %v1650, %v1650
    %1652 = vmatprep.subr.bf16.mxu0 0
    %1653 = vmatpush1.bf16.msra.mxu0 %v1222
    %1654 = vmatprep.subr.bf16.mxu0 0
    %1655 = vmatpush1.bf16.msra.mxu0 %v1223
    %1656 = vmatprep.subr.bf16.mxu0 0
    %1657 = vmatpush1.bf16.msra.mxu0 %v1224
    %1658 = vmatprep.subr.bf16.mxu0 0
    %1659 = vmatpush1.bf16.msra.mxu0 %v1225
    %1660 = vmatprep.subr.bf16.mxu0 0
    %1661 = vmatpush1.bf16.msra.mxu0 %v1226
    %1662 = vmatprep.subr.bf16.mxu0 0
    %1663 = vmatpush1.bf16.msra.mxu0 %v1227
    %1664 = vmatprep.subr.bf16.mxu0 0
    %1665 = vmatpush1.bf16.msra.mxu0 %v1228
    %1666 = vmatprep.subr.bf16.mxu0 0
    %1667 = vmatpush1.bf16.msra.mxu0 %v1229
    %1668 = vmatprep.subr.bf16.mxu0 0
    %1669 = vmatpush1.bf16.msra.mxu0 0
    %1670 = vmatprep.subr.bf16.mxu0 0
    %1671 = vmatpush1.bf16.msra.mxu0 0
    %1672 = vmatprep.subr.bf16.mxu0 0
    %1673 = vmatpush1.bf16.msra.mxu0 0
    %1674 = vmatprep.subr.bf16.mxu0 0
    %1675 = vmatpush1.bf16.msra.mxu0 0
    %1676 = vmatprep.subr.bf16.mxu0 0
    %1677 = vmatpush1.bf16.msra.mxu0 0
    %1678 = vmatprep.subr.bf16.mxu0 0
    %1679 = vmatpush1.bf16.msra.mxu0 0
    %1680 = vmatprep.subr.bf16.mxu0 0
    %1681 = vmatpush1.bf16.msra.mxu0 0
    %1682 = vmatprep.subr.bf16.mxu0 0
    %1683 = vmatpush1.bf16.msra.mxu0 0
    %1684 = vmatprep.mubr.bf16.mxu0 0
    %1685 = vmatmul.mubr.bf16.gmra.mrb[0].mxu0 %v1651
    %v1686 = vpop.f32.mrb[0].mxu0
    %v1687 = vadd.f32 0.0, %v1686
    %v1688 = vpop.f32.mrb[0].mxu0
    %v1689 = vpop.f32.mrb[0].mxu0
    %v1690 = vpop.f32.mrb[0].mxu0
    %1691 = vdwg.mxu0
    %v1693 = vrot.slane %v1687, 4
    %v1695 = vadd.f32 %v1187, %v1693
    %v1696 = vtanh.pop %v1695
    %v1697 = vxor.u32 %v1695, 2147483648
    %v1698 = vmul.f32 %v1697, 1.442695
    %v1699 = vpow.pop %v1698
    %v1700 = vadd.f32 %v1699, 1.0
    %v1701 = vrcp.pop %v1700
    %v1702 = vmul.f32 1.0, %v1701
    %v1703 = vsel %vm309, %v1696, %v1702
    %v1705 = vrot.slane %v1703, 4
    %1707 = vrot.lane.b32.xlu0 %v1705, 96
    %v1708 = vpop.permute.xlu0 %1707
    %1709 = vrot.lane.b32.xlu0 %v1705, 64
    %v1710 = vpop.permute.xlu0 %1709
    %1711 = vrot.lane.b32.xlu0 %v1705, 32
    %v1712 = vpop.permute.xlu0 %1711
    %v1713 = vmul.f32 %v1708, %v1648
    %v1715 = vrot.slane %v1710, 4
    %v1717 = vmul.f32 %v1703, %v1715
    %v1719 = vrot.slane %v1717, 4
    %v1721 = vadd.f32 %v1713, %v1719
    %v1722 = vtanh.pop %v1721
    %v1723 = vmul.f32 %v1712, %v1722
    %v1724 = vpack.c.bf16 %v1723, %v1723
    %1725 = vmatprep.subr.bf16.mxu0 0
    %1726 = vmatpush1.bf16.msra.mxu0 %v1222
    %1727 = vmatprep.subr.bf16.mxu0 0
    %1728 = vmatpush1.bf16.msra.mxu0 %v1223
    %1729 = vmatprep.subr.bf16.mxu0 0
    %1730 = vmatpush1.bf16.msra.mxu0 %v1224
    %1731 = vmatprep.subr.bf16.mxu0 0
    %1732 = vmatpush1.bf16.msra.mxu0 %v1225
    %1733 = vmatprep.subr.bf16.mxu0 0
    %1734 = vmatpush1.bf16.msra.mxu0 %v1226
    %1735 = vmatprep.subr.bf16.mxu0 0
    %1736 = vmatpush1.bf16.msra.mxu0 %v1227
    %1737 = vmatprep.subr.bf16.mxu0 0
    %1738 = vmatpush1.bf16.msra.mxu0 %v1228
    %1739 = vmatprep.subr.bf16.mxu0 0
    %1740 = vmatpush1.bf16.msra.mxu0 %v1229
    %1741 = vmatprep.subr.bf16.mxu0 0
    %1742 = vmatpush1.bf16.msra.mxu0 0
    %1743 = vmatprep.subr.bf16.mxu0 0
    %1744 = vmatpush1.bf16.msra.mxu0 0
    %1745 = vmatprep.subr.bf16.mxu0 0
    %1746 = vmatpush1.bf16.msra.mxu0 0
    %1747 = vmatprep.subr.bf16.mxu0 0
    %1748 = vmatpush1.bf16.msra.mxu0 0
    %1749 = vmatprep.subr.bf16.mxu0 0
    %1750 = vmatpush1.bf16.msra.mxu0 0
    %1751 = vmatprep.subr.bf16.mxu0 0
    %1752 = vmatpush1.bf16.msra.mxu0 0
    %1753 = vmatprep.subr.bf16.mxu0 0
    %1754 = vmatpush1.bf16.msra.mxu0 0
    %1755 = vmatprep.subr.bf16.mxu0 0
    %1756 = vmatpush1.bf16.msra.mxu0 0
    %1757 = vmatprep.mubr.bf16.mxu0 0
    %1758 = vmatmul.mubr.bf16.gmra.mrb[0].mxu0 %v1724
    %v1759 = vpop.f32.mrb[0].mxu0
    %v1760 = vadd.f32 0.0, %v1759
    %v1761 = vpop.f32.mrb[0].mxu0
    %v1762 = vpop.f32.mrb[0].mxu0
    %v1763 = vpop.f32.mrb[0].mxu0
    %1764 = vdwg.mxu0
    %v1766 = vrot.slane %v1760, 2
    %v1768 = vadd.f32 %v1187, %v1766
    %v1769 = vtanh.pop %v1768
    %v1770 = vxor.u32 %v1768, 2147483648
    %v1771 = vmul.f32 %v1770, 1.442695
    %v1772 = vpow.pop %v1771
    %v1773 = vadd.f32 %v1772, 1.0
    %v1774 = vrcp.pop %v1773
    %v1775 = vmul.f32 1.0, %v1774
    %v1776 = vsel %vm309, %v1769, %v1775
    %v1778 = vrot.slane %v1776, 6
    %1780 = vrot.lane.b32.xlu0 %v1778, 96
    %v1781 = vpop.permute.xlu0 %1780
    %1782 = vrot.lane.b32.xlu0 %v1778, 64
    %v1783 = vpop.permute.xlu0 %1782
    %1784 = vrot.lane.b32.xlu0 %v1778, 32
    %v1785 = vpop.permute.xlu0 %1784
    %v1786 = vmul.f32 %v1781, %v1721
    %v1788 = vrot.slane %v1783, 2
    %v1790 = vmul.f32 %v1776, %v1788
    %v1792 = vrot.slane %v1790, 6
    %v1794 = vadd.f32 %v1786, %v1792
    %v1795 = vtanh.pop %v1794
    %v1796 = vmul.f32 %v1785, %v1795
    %v1797 = vpack.c.bf16 %v1796, %v1796
    %v1798 = vld [vmem:[%s5] sm:$0xf]
    %v1799 = vld [vmem:[%s5 + $0x4] sm:$0xf]
    %v1800 = vld [vmem:[%s5 + $0x8] sm:$0xf]
    %v1801 = vld [vmem:[%s5 + $0xc] sm:$0xf]
    %v1802 = vld [vmem:[%s5 + $0x10] sm:$0xf]
    %v1803 = vld [vmem:[%s5 + $0x14] sm:$0xf]
    %v1804 = vld [vmem:[%s5 + $0x18] sm:$0xf]
    %v1805 = vld [vmem:[%s5 + $0x1c] sm:$0xf]
    %v1806 = vld [vmem:[%s5 + $0x20] sm:$0xf]
    %v1807 = vld [vmem:[%s5 + $0x24] sm:$0xf]
    %v1808 = vld [vmem:[%s5 + $0x28] sm:$0xf]
    %v1809 = vld [vmem:[%s5 + $0x2c] sm:$0xf]
    %v1810 = vld [vmem:[%s5 + $0x30] sm:$0xf]
    %v1811 = vld [vmem:[%s5 + $0x34] sm:$0xf]
    %v1812 = vld [vmem:[%s5 + $0x38] sm:$0xf]
    %v1813 = vld [vmem:[%s5 + $0x3c] sm:$0xf]
    %v1814 = vld [vmem:[%s6] sm:$0x1]
    %v1816 = vlaneseq
    %v1817 = vshrl.u32 %v1816, 7
    %v1818 = vsub.s32 0, %v1817
    %v1819 = vrot.slane %v1814, %v1818
    %v1837 = vunpack.c.l.b16 %v1798
    %v1838 = vunpack.c.l.b16 %v1799
    %v1839 = vunpack.c.l.b16 %v1800
    %v1840 = vunpack.c.l.b16 %v1801
    %v1841 = vunpack.c.l.b16 %v1802
    %v1842 = vunpack.c.l.b16 %v1803
    %v1843 = vunpack.c.l.b16 %v1804
    %v1844 = vunpack.c.l.b16 %v1805
    %v1845 = vunpack.c.l.b16 %v1806
    %v1846 = vunpack.c.l.b16 %v1807
    %v1847 = vunpack.c.l.b16 %v1808
    %v1848 = vunpack.c.l.b16 %v1809
    %v1849 = vunpack.c.l.b16 %v1810
    %v1850 = vunpack.c.l.b16 %v1811
    %v1851 = vunpack.c.l.b16 %v1812
    %v1852 = vunpack.c.l.b16 %v1813
    %v1853 = vpack.c.b16 %v1838, %v1837
    %v1854 = vpack.c.b16 %v1840, %v1839
    %v1855 = vpack.c.b16 %v1842, %v1841
    %v1856 = vpack.c.b16 %v1844, %v1843
    %v1857 = vpack.c.b16 %v1846, %v1845
    %v1858 = vpack.c.b16 %v1848, %v1847
    %v1859 = vpack.c.b16 %v1850, %v1849
    %v1860 = vpack.c.b16 %v1852, %v1851
    %1869 = vmatprep.subr.bf16.mxu0 0
    %1870 = vmatpush1.bf16.msra.mxu0 %v1853
    %1871 = vmatprep.subr.bf16.mxu0 0
    %1872 = vmatpush1.bf16.msra.mxu0 %v1854
    %1873 = vmatprep.subr.bf16.mxu0 0
    %1874 = vmatpush1.bf16.msra.mxu0 %v1855
    %1875 = vmatprep.subr.bf16.mxu0 0
    %1876 = vmatpush1.bf16.msra.mxu0 %v1856
    %1877 = vmatprep.subr.bf16.mxu0 0
    %1878 = vmatpush1.bf16.msra.mxu0 %v1857
    %1879 = vmatprep.subr.bf16.mxu0 0
    %1880 = vmatpush1.bf16.msra.mxu0 %v1858
    %1881 = vmatprep.subr.bf16.mxu0 0
    %1882 = vmatpush1.bf16.msra.mxu0 %v1859
    %1883 = vmatprep.subr.bf16.mxu0 0
    %1884 = vmatpush1.bf16.msra.mxu0 %v1860
    %1885 = vmatprep.subr.bf16.mxu0 0
    %1886 = vmatpush1.bf16.msra.mxu0 0
    %1887 = vmatprep.subr.bf16.mxu0 0
    %1888 = vmatpush1.bf16.msra.mxu0 0
    %1889 = vmatprep.subr.bf16.mxu0 0
    %1890 = vmatpush1.bf16.msra.mxu0 0
    %1891 = vmatprep.subr.bf16.mxu0 0
    %1892 = vmatpush1.bf16.msra.mxu0 0
    %1893 = vmatprep.subr.bf16.mxu0 0
    %1894 = vmatpush1.bf16.msra.mxu0 0
    %1895 = vmatprep.subr.bf16.mxu0 0
    %1896 = vmatpush1.bf16.msra.mxu0 0
    %1897 = vmatprep.subr.bf16.mxu0 0
    %1898 = vmatpush1.bf16.msra.mxu0 0
    %1899 = vmatprep.subr.bf16.mxu0 0
    %1900 = vmatpush1.bf16.msra.mxu0 0
    %1901 = vmatprep.mubr.bf16.mxu0 0
    %1902 = vmatmul.mubr.bf16.gmra.mrb[0].mxu0 %v1797
    %v1903 = vpop.f32.mrb[0].mxu0
    %v1904 = vadd.f32 %v1819, %v1903
    %v1905 = vpop.f32.mrb[0].mxu0
    %v1906 = vpop.f32.mrb[0].mxu0
    %v1907 = vpop.f32.mrb[0].mxu0
    %1908 = vdwg.mxu0
    %vm1909 = vcmask 17408
    %1910 = vst.msk [vmem:[#allocation10] sm:$0x3] %vm1909, %v1904
    // Predicated region
    $region42: #{sentiment_lstm_forward.1} parent=1 // pred_check
      _
    $region43: #{sentiment_lstm_forward.1} parent=1 // pred_check_branch
      %1912 = sbr.rel (0) target = $region45
    $region44: #{sentiment_lstm_forward.1} parent=1 // pred_region
      %s1914 = ssub.s32 32, 32
      %1915 = vsyncadd [#allocation5], %s1914
      %s1917 = sshll.u32 [#allocation10], 4
      %s1918 = int_to_ptr.vmem [resolvable:$true] %s1917
      %1920 = dma.vmem_to_hbm [thread:$0]  %s1918, 32, %s7, [#allocation5]
    $region45: #{sentiment_lstm_forward.1} parent=1 // pred_fallthru
      _
    // Predicated region
    $region46: #{sentiment_lstm_forward.1} parent=1 // pred_check
      _
    $region47: #{sentiment_lstm_forward.1} parent=1 // pred_check_branch
      %1922 = sbr.rel (0) target = $region49
    $region48: #{sentiment_lstm_forward.1} parent=1 // pred_region
      %1923 = dma.done [#allocation5], 32
    $region49: #{sentiment_lstm_forward.1} parent=1 // pred_fallthru
      _
    %1924 = vsyncpa [#allocation4], 1
    %1925 = vsyncpa [#allocation9], 1
    %1926 = vsyncpa [#allocation5], 1
    %1927 = vsyncpa [#allocation6], 1

</llo_original>
